<compile_context>
chip_gen: v5e
topology: v5e:2x2
jax: 0.10.0
libtpu: 0.0.40
codegen_flags: <defaults>
</compile_context>

<pallas_src>
import math

import jax
import jax.numpy as jnp
from jax.experimental import pallas as pl
from jax.experimental.pallas import tpu as pltpu


# ----------------------------- config (small) -----------------------------
VOCAB = 64
CTX = 8            # context_length == seq len used in the example
EMB = 32
FF_MULT = 2
N_HEADS = 4
N_LAYERS = 2
BATCH = 2
HEAD_DIM = EMB // N_HEADS
FF_DIM = EMB * FF_MULT
QKV_DIM = 3 * EMB
VPAD = 128          # lane-dense vocab head; wrapper slices back to VOCAB
LN_EPS = 1e-5
BIAS_ROWS = 8       # 3 rows per layer (qkv / mlp-in / mlp-out) + 1 vocab row, padded to 8


# ----------------------------- in-kernel helpers ---------------------------
def _ln_center(x):
    # gamma/beta are folded into the following matmul wrapper-side
    mean = jnp.mean(x, axis=-1, keepdims=True)
    var = jnp.mean((x - mean) ** 2, axis=-1, keepdims=True)
    return (x - mean) * jax.lax.rsqrt(var + LN_EPS)


def _gelu(x):
    # exact (erf-based) GELU, matching torch.nn.GELU()
    return 0.5 * x * (1.0 + jax.lax.erf(x * (1.0 / math.sqrt(2.0))))


# ----------------------------- fused Pallas kernel --------------------------
def gpt_fused_kernel(
    x_ref, cs_ref, mask_ref, rope_p_ref,
    wqkv_ref, wo_ref, w_in_ref, w_out_ref, w_vocab_ref, biases_ref,
    o_ref,
):
    x = x_ref[...]                       # (B*T, D) f32 residual stream (VMEM-resident)
    cos3 = cs_ref[0]                     # (B*T, 3D) f32; ones over the V lane range
    sin3 = cs_ref[1]                     # (B*T, 3D) f32; zeros over the V lane range
    mask = mask_ref[...]                 # (B*T, B*T) additive mask: 0 allowed / -1e30 masked
    rope_p = rope_p_ref[...]             # (3D, 3D) bf16 signed rotate-half blocks (zero on V)

    for l in range(N_LAYERS):            # unrolled: weights indexed statically
        # ---------------- attention block ----------------
        xn = _ln_center(x)
        qkv = jnp.dot(xn.astype(jnp.bfloat16), wqkv_ref[l],
                      preferred_element_type=jnp.float32)           # (B*T, 3D), one MXU push
        qkv = qkv + biases_ref[3 * l:3 * l + 1, :][:, :QKV_DIM]     # folded LN beta (+ scale)
        # fused RoPE for q AND k in a single MXU push; V range passes through unchanged
        rot = jnp.dot(qkv.astype(jnp.bfloat16), rope_p,
                      preferred_element_type=jnp.float32)
        qkv = qkv * cos3 + rot * sin3
        qkvb = qkv.astype(jnp.bfloat16)

        ctx_heads = []
        for h in range(N_HEADS):
            lo = h * HEAD_DIM
            hi = lo + HEAD_DIM
            # scores over the folded (batch*seq) axis, masked block-diagonal + causal
            s = jax.lax.dot_general(
                qkvb[:, lo:hi], qkvb[:, EMB + lo:EMB + hi],
                (((1,), (1,)), ((), ())),
                preferred_element_type=jnp.float32) + mask           # (B*T, B*T)
            m = jnp.max(s, axis=-1, keepdims=True)
            p = jnp.exp(s - m)
            p = p * pl.reciprocal(jnp.sum(p, axis=-1, keepdims=True), approx=True)
            ctx_heads.append(
                jnp.dot(p.astype(jnp.bfloat16), qkvb[:, 2 * EMB + lo:2 * EMB + hi],
                        preferred_element_type=jnp.float32))         # (B*T, hd)
        ctx = jnp.concatenate(ctx_heads, axis=-1)                    # (B*T, D) lane concat
        attn = jnp.dot(ctx.astype(jnp.bfloat16), wo_ref[l],
                       preferred_element_type=jnp.float32)           # single K=32 matmul
        x = x + attn                      # dropout = identity

        # ---------------- MLP block ----------------
        xn2 = _ln_center(x)
        h1 = jnp.dot(xn2.astype(jnp.bfloat16), w_in_ref[l],
                     preferred_element_type=jnp.float32)
        h1 = _gelu(h1 + biases_ref[3 * l + 1:3 * l + 2, :][:, :FF_DIM])
        mlp = jnp.dot(h1.astype(jnp.bfloat16), w_out_ref[l],
                      preferred_element_type=jnp.float32)
        x = x + mlp + biases_ref[3 * l + 2:3 * l + 3, :][:, :EMB]    # dropout = identity

    # ---------------- final LN + vocab head (lane-dense 128-wide output) ----------------
    xn = _ln_center(x)
    o_ref[...] = (jnp.dot(xn.astype(jnp.bfloat16), w_vocab_ref[...],
                          preferred_element_type=jnp.float32)
                  + biases_ref[3 * N_LAYERS:3 * N_LAYERS + 1, :])


# ----------------------------- wrapper-side precompute ----------------------
def compute_rope_angles(head_dim, theta_base, context_length):
    freqs = theta_base ** (-2.0 * (jnp.arange(0, head_dim // 2, dtype=jnp.float32) / head_dim))
    positions = jnp.arange(context_length, dtype=jnp.float32)[:, None]
    angles = positions * freqs[None, :]
    angles = jnp.concatenate([angles, angles], axis=1)
    return jnp.cos(angles), jnp.sin(angles)


def _rope_perm_qkv(emb, n_heads):
    """Signed block-diagonal permutation over the fused (3D) qkv lanes:
    per-head rotate-half on the Q and K column ranges, zero on the V range."""
    hd = emb // n_heads
    d3 = 3 * emb
    j = jnp.arange(d3)
    c = j % hd
    src = jnp.where(c < hd // 2, j + hd // 2, j - hd // 2)
    sign = jnp.where(c < hd // 2, -1.0, 1.0)
    sign = jnp.where(j < 2 * emb, sign, 0.0)          # V range: no rotation
    return jnp.zeros((d3, d3), jnp.float32).at[src, j].set(sign.astype(jnp.float32))


def _attention_bias(batch, seq):
    """Block-diagonal (per batch) causal additive mask over the folded (B*T) axis."""
    r = jnp.arange(batch * seq)
    b = r // seq
    t = r % seq
    allowed = (b[:, None] == b[None, :]) & (t[None, :] <= t[:, None])
    return jnp.where(allowed, 0.0, -1e30).astype(jnp.float32)


def _pad_row(row, width=128):
    row = jnp.asarray(row, jnp.float32).reshape(1, -1)
    return jnp.pad(row, ((0, 0), (0, width - row.shape[1])))


def pack_params(params):
    """Fuse QKV (with 1/sqrt(hd) folded into Wq), fold LN gamma into the rows of the
    following matmul and LN beta into its bias row, stack per-layer weights on a leading
    layer axis, pad the vocab head to 128 lanes, and pack every bias row into one
    (8, 128) f32 slab (single prologue DMA)."""
    scale = 1.0 / math.sqrt(HEAD_DIM)
    wqkv_l, wo_l, w_in_l, w_out_l, bias_rows = [], [], [], [], []
    for lp in params["layers"]:
        wqkv = jnp.concatenate([lp["wq"] * scale, lp["wk"], lp["wv"]], axis=1)   # (D, 3D)
        g1 = lp["ln1_g"].reshape(-1, 1)
        b1 = lp["ln1_b"].reshape(1, -1)
        g2 = lp["ln2_g"].reshape(-1, 1)
        b2 = lp["ln2_b"].reshape(1, -1)
        wqkv_l.append((g1 * wqkv).astype(jnp.bfloat16))
        wo_l.append(lp["wo"].astype(jnp.bfloat16))
        w_in_l.append((g2 * lp["w_in"]).astype(jnp.bfloat16))
        w_out_l.append(lp["w_out"].astype(jnp.bfloat16))
        bias_rows.append(_pad_row(b1 @ wqkv))                        # row 3l   (width 3D)
        bias_rows.append(_pad_row(b2 @ lp["w_in"] + lp["b_in"]))     # row 3l+1 (width DF)
        bias_rows.append(_pad_row(lp["b_out"]))                      # row 3l+2 (width D)
    gf = params["ln_f_g"].reshape(-1, 1)
    bf = params["ln_f_b"].reshape(1, -1)
    w_vocab = jnp.pad(gf * params["w_vocab"],
                      ((0, 0), (0, VPAD - VOCAB))).astype(jnp.bfloat16)          # (D, 128)
    bias_rows.append(_pad_row(bf @ params["w_vocab"]))               # row 3L   (width V)
    while len(bias_rows) < BIAS_ROWS:
        bias_rows.append(jnp.zeros((1, 128), jnp.float32))
    return {
        "wqkv": jnp.stack(wqkv_l),      # (L, D, 3D) bf16
        "wo": jnp.stack(wo_l),          # (L, D, D)  bf16
        "w_in": jnp.stack(w_in_l),      # (L, D, DF) bf16
        "w_out": jnp.stack(w_out_l),    # (L, DF, D) bf16
        "w_vocab": w_vocab,             # (D, 128)   bf16, lane-dense
        "biases": jnp.concatenate(bias_rows, axis=0),   # (8, 128) f32
    }


def gpt_forward(tokens, params):
    B, T = tokens.shape
    # TODO(synk): embedding gather stays as plain-JAX glue (jnp.take); no Pallas win at this size.
    x = jnp.take(params["embedding"], tokens, axis=0).reshape(B * T, EMB).astype(jnp.float32)

    cos, sin = compute_rope_angles(HEAD_DIM, 10000.0, CTX)
    cos_qk = jnp.tile(cos[:T], (B, 2 * N_HEADS))         # (B*T, 2D): Q range + K range
    sin_qk = jnp.tile(sin[:T], (B, 2 * N_HEADS))
    cos3 = jnp.concatenate([cos_qk, jnp.ones((B * T, EMB), jnp.float32)], axis=1)
    sin3 = jnp.concatenate([sin_qk, jnp.zeros((B * T, EMB), jnp.float32)], axis=1)
    cos_sin = jnp.stack([cos3, sin3])                    # (2, B*T, 3D): one operand / one DMA
    mask = _attention_bias(B, T)                         # (B*T, B*T)
    rope_p = _rope_perm_qkv(EMB, N_HEADS).astype(jnp.bfloat16)

    kp = pack_params(params)
    operands = (x, cos_sin, mask, rope_p,
                kp["wqkv"], kp["wo"], kp["w_in"], kp["w_out"], kp["w_vocab"], kp["biases"])
    vmem = pl.BlockSpec(memory_space=pltpu.MemorySpace.VMEM)   # whole array, VMEM-resident
    logits_pad = pl.pallas_call(
        gpt_fused_kernel,
        out_shape=jax.ShapeDtypeStruct((B * T, VPAD), jnp.float32),
        in_specs=[vmem] * len(operands),
        out_specs=vmem,
    )(*operands)
    return logits_pad[:, :VOCAB].reshape(B, T, VOCAB)


# ----------------------------- params ---------------------------------------
def init_params(key):
    ks = jax.random.split(key, 2 + N_LAYERS)
    hk = jax.random.split(ks[1], 3)
    params = {
        "embedding": 0.02 * jax.random.normal(ks[0], (VOCAB, EMB), jnp.float32),
        "ln_f_g": 1.0 + 0.1 * jax.random.normal(hk[1], (1, EMB), jnp.float32),
        "ln_f_b": 0.1 * jax.random.normal(hk[2], (1, EMB), jnp.float32),
        "w_vocab": 0.02 * jax.random.normal(hk[0], (EMB, VOCAB), jnp.float32),   # (in, out)
    }
    layers = []
    for i in range(N_LAYERS):
        lk = jax.random.split(ks[2 + i], 12)
        layers.append({
            "ln1_g": 1.0 + 0.1 * jax.random.normal(lk[6], (1, EMB), jnp.float32),
            "ln1_b": 0.1 * jax.random.normal(lk[7], (1, EMB), jnp.float32),
            "wq": 0.02 * jax.random.normal(lk[0], (EMB, EMB), jnp.float32),
            "wk": 0.02 * jax.random.normal(lk[1], (EMB, EMB), jnp.float32),
            "wv": 0.02 * jax.random.normal(lk[2], (EMB, EMB), jnp.float32),
            "wo": 0.02 * jax.random.normal(lk[3], (EMB, EMB), jnp.float32),
            "ln2_g": 1.0 + 0.1 * jax.random.normal(lk[8], (1, EMB), jnp.float32),
            "ln2_b": 0.1 * jax.random.normal(lk[9], (1, EMB), jnp.float32),
            "w_in": 0.02 * jax.random.normal(lk[4], (EMB, FF_DIM), jnp.float32),
            "b_in": 0.02 * jax.random.normal(lk[10], (1, FF_DIM), jnp.float32),
            "w_out": 0.02 * jax.random.normal(lk[5], (FF_DIM, EMB), jnp.float32),
            "b_out": 0.02 * jax.random.normal(lk[11], (1, EMB), jnp.float32),
        })
    params["layers"] = layers
    return params


# ----------------------------- pure-JAX reference ----------------------------
def _ref_forward(tokens, params):
    """Standard (unfolded) computation matching the PyTorch module in eval mode,
    with the kernel's precision policy: bf16 MXU operands, f32 accumulate/elementwise."""
    x = jnp.take(params["embedding"], tokens, axis=0)
    B, T, D = x.shape
    cos, sin = compute_rope_angles(HEAD_DIM, 10000.0, CTX)
    cos, sin = cos[:T], sin[:T]

    def bdot(a, b):
        return jnp.dot(a.astype(jnp.bfloat16), b.astype(jnp.bfloat16),
                       preferred_element_type=jnp.float32)

    def ln(v, g, b):
        m = jnp.mean(v, -1, keepdims=True)
        var = jnp.mean((v - m) ** 2, -1, keepdims=True)
        return (v - m) * jax.lax.rsqrt(var + LN_EPS) * g + b

    def rope4(v):  # (B, H, T, hd)
        hd = v.shape[-1]
        lhs, rhs = v[..., : hd // 2], v[..., hd // 2:]
        rot = jnp.concatenate([-rhs, lhs], axis=-1)
        return v * cos[None, None] + rot * sin[None, None]

    for lp in params["layers"]:
        res = x
        xn = ln(x, lp["ln1_g"], lp["ln1_b"])
        q = bdot(xn, lp["wq"]).reshape(B, T, N_HEADS, HEAD_DIM).transpose(0, 2, 1, 3)
        k = bdot(xn, lp["wk"]).reshape(B, T, N_HEADS, HEAD_DIM).transpose(0, 2, 1, 3)
        v = bdot(xn, lp["wv"]).reshape(B, T, N_HEADS, HEAD_DIM).transpose(0, 2, 1, 3)
        q, k = rope4(q), rope4(k)
        s = jnp.einsum("bhtd,bhsd->bhts", q.astype(jnp.bfloat16), k.astype(jnp.bfloat16),
                       preferred_element_type=jnp.float32) / math.sqrt(HEAD_DIM)
        mask = jnp.triu(jnp.ones((T, T), bool), 1)
        s = jnp.where(mask, -jnp.inf, s)
        w = jax.nn.softmax(s, axis=-1)
        ctx = jnp.einsum("bhts,bhsd->bhtd", w.astype(jnp.bfloat16), v.astype(jnp.bfloat16),
                         preferred_element_type=jnp.float32)
        ctx = ctx.transpose(0, 2, 1, 3).reshape(B, T, D)
        x = res + bdot(ctx, lp["wo"])
        res = x
        xn = ln(x, lp["ln2_g"], lp["ln2_b"])
        h = bdot(xn, lp["w_in"]) + lp["b_in"]
        h = 0.5 * h * (1.0 + jax.lax.erf(h / math.sqrt(2.0)))
        x = res + bdot(h, lp["w_out"]) + lp["b_out"]
    xn = ln(x, params["ln_f_g"], params["ln_f_b"])
    return bdot(xn, params["w_vocab"])


if __name__ == "__main__":
    key = jax.random.PRNGKey(0)
    pkey, tkey = jax.random.split(key)
    params = init_params(pkey)
    tokens = jax.random.randint(tkey, (BATCH, CTX), 0, VOCAB, dtype=jnp.int32)

    logits = gpt_forward(tokens, params)
    logits = jax.block_until_ready(logits)
    assert logits.shape == (BATCH, CTX, VOCAB)

    ref = _ref_forward(tokens, params)
    # bf16 MXU operands + approx-reciprocal softmax + LN-fold rounding => relaxed tolerance
    assert jnp.allclose(logits, ref, atol=2e-2, rtol=2e-2), "mismatch vs reference"

    print("KERNEL_OK")
</pallas_src>

<mosaic_0001>
module attributes {stable_mosaic.version = 11 : i64} {
  func.func @gpt_fused_kernel(%arg0: memref<16x32xf32, #tpu.memory_space<vmem>>, %arg1: memref<2x16x96xf32, #tpu.memory_space<vmem>>, %arg2: memref<16x16xf32, #tpu.memory_space<vmem>>, %arg3: memref<96x96xbf16, #tpu.memory_space<vmem>>, %arg4: memref<2x32x96xbf16, #tpu.memory_space<vmem>>, %arg5: memref<2x32x32xbf16, #tpu.memory_space<vmem>>, %arg6: memref<2x32x64xbf16, #tpu.memory_space<vmem>>, %arg7: memref<2x64x32xbf16, #tpu.memory_space<vmem>>, %arg8: memref<32x128xbf16, #tpu.memory_space<vmem>>, %arg9: memref<8x128xf32, #tpu.memory_space<vmem>>, %arg10: memref<16x128xf32, #tpu.memory_space<vmem>>) attributes {dimension_semantics = [], scalar_prefetch = 0 : i64, scratch_operands = 0 : i64, tpu.core_type = #tpu.core_type<tc>} {
    %c0 = arith.constant 0 : index
    %c0_0 = arith.constant 0 : index
    %0 = vector.load %arg0[%c0, %c0_0] : memref<16x32xf32, #tpu.memory_space<vmem>>, vector<16x32xf32>
    %c0_1 = arith.constant 0 : index
    %c0_2 = arith.constant 0 : index
    %c0_3 = arith.constant 0 : index
    %1 = vector.load %arg1[%c0_1, %c0_2, %c0_3] : memref<2x16x96xf32, #tpu.memory_space<vmem>>, vector<1x16x96xf32>
    %2 = vector.shape_cast %1 : vector<1x16x96xf32> to vector<16x96xf32>
    %c1 = arith.constant 1 : index
    %c0_4 = arith.constant 0 : index
    %c0_5 = arith.constant 0 : index
    %3 = vector.load %arg1[%c1, %c0_4, %c0_5] : memref<2x16x96xf32, #tpu.memory_space<vmem>>, vector<1x16x96xf32>
    %4 = vector.shape_cast %3 : vector<1x16x96xf32> to vector<16x96xf32>
    %c0_6 = arith.constant 0 : index
    %c0_7 = arith.constant 0 : index
    %5 = vector.load %arg2[%c0_6, %c0_7] : memref<16x16xf32, #tpu.memory_space<vmem>>, vector<16x16xf32>
    %c0_8 = arith.constant 0 : index
    %c0_9 = arith.constant 0 : index
    %6 = vector.load %arg3[%c0_8, %c0_9] : memref<96x96xbf16, #tpu.memory_space<vmem>>, vector<96x96xbf16>
    %cst = arith.constant dense<0.000000e+00> : vector<16xf32>
    %7 = vector.multi_reduction <add>, %0, %cst [1] : vector<16x32xf32> to vector<16xf32>
    %8 = vector.shape_cast %7 : vector<16xf32> to vector<16x1xf32>
    %cst_10 = arith.constant 3.200000e+01 : f32
    %9 = vector.broadcast %cst_10 : f32 to vector<16x1xf32>
    %10 = arith.divf %8, %9 : vector<16x1xf32>
    %11 = vector.broadcast %10 : vector<16x1xf32> to vector<16x32xf32>
    %12 = arith.subf %0, %11 : vector<16x32xf32>
    %13 = arith.mulf %12, %12 : vector<16x32xf32>
    %cst_11 = arith.constant dense<0.000000e+00> : vector<16xf32>
    %14 = vector.multi_reduction <add>, %13, %cst_11 [1] : vector<16x32xf32> to vector<16xf32>
    %15 = vector.shape_cast %14 : vector<16xf32> to vector<16x1xf32>
    %cst_12 = arith.constant 3.200000e+01 : f32
    %16 = vector.broadcast %cst_12 : f32 to vector<16x1xf32>
    %17 = arith.divf %15, %16 : vector<16x1xf32>
    %18 = vector.broadcast %10 : vector<16x1xf32> to vector<16x32xf32>
    %19 = arith.subf %0, %18 : vector<16x32xf32>
    %cst_13 = arith.constant 9.99999974E-6 : f32
    %20 = vector.broadcast %cst_13 : f32 to vector<16x1xf32>
    %21 = arith.addf %17, %20 : vector<16x1xf32>
    %22 = math.rsqrt %21 : vector<16x1xf32>
    %23 = vector.broadcast %22 : vector<16x1xf32> to vector<16x32xf32>
    %24 = arith.mulf %19, %23 : vector<16x32xf32>
    %25 = arith.truncf %24 : vector<16x32xf32> to vector<16x32xbf16>
    %c0_14 = arith.constant 0 : index
    %c0_15 = arith.constant 0 : index
    %c0_16 = arith.constant 0 : index
    %26 = vector.load %arg4[%c0_14, %c0_15, %c0_16] : memref<2x32x96xbf16, #tpu.memory_space<vmem>>, vector<1x32x96xbf16>
    %27 = vector.shape_cast %26 : vector<1x32x96xbf16> to vector<32x96xbf16>
    %cst_17 = arith.constant dense<0.000000e+00> : vector<16x96xf32>
    %28 = tpu.matmul %25, %27, %cst_17 {dimension_numbers = #tpu.dot_dimension_numbers<[1], [0], [0], [1], [0, 0, 1, 1], [], []>} : vector<16x32xbf16>, vector<32x96xbf16>, vector<16x96xf32> -> vector<16x96xf32>
    %c0_18 = arith.constant 0 : index
    %c0_19 = arith.constant 0 : index
    %29 = vector.load %arg9[%c0_18, %c0_19] : memref<8x128xf32, #tpu.memory_space<vmem>>, vector<1x128xf32>
    %30 = vector.extract_strided_slice %29 {offsets = [0, 0], sizes = [1, 96], strides = [1, 1]} : vector<1x128xf32> to vector<1x96xf32>
    %31 = vector.broadcast %30 : vector<1x96xf32> to vector<16x96xf32>
    %32 = arith.addf %28, %31 : vector<16x96xf32>
    %33 = arith.truncf %32 : vector<16x96xf32> to vector<16x96xbf16>
    %cst_20 = arith.constant dense<0.000000e+00> : vector<16x96xf32>
    %34 = tpu.matmul %33, %6, %cst_20 {dimension_numbers = #tpu.dot_dimension_numbers<[1], [0], [0], [1], [0, 0, 1, 1], [], []>} : vector<16x96xbf16>, vector<96x96xbf16>, vector<16x96xf32> -> vector<16x96xf32>
    %35 = arith.mulf %32, %2 : vector<16x96xf32>
    %36 = arith.mulf %34, %4 : vector<16x96xf32>
    %37 = arith.addf %35, %36 : vector<16x96xf32>
    %38 = arith.truncf %37 : vector<16x96xf32> to vector<16x96xbf16>
    %39 = vector.extract_strided_slice %38 {offsets = [0, 0], sizes = [16, 8], strides = [1, 1]} : vector<16x96xbf16> to vector<16x8xbf16>
    %40 = vector.extract_strided_slice %38 {offsets = [0, 32], sizes = [16, 8], strides = [1, 1]} : vector<16x96xbf16> to vector<16x8xbf16>
    %cst_21 = arith.constant dense<0.000000e+00> : vector<16x16xf32>
    %41 = tpu.matmul %39, %40, %cst_21 {dimension_numbers = #tpu.dot_dimension_numbers<[1], [1], [0], [0], [0, 0, 1, 0], [], []>} : vector<16x8xbf16>, vector<16x8xbf16>, vector<16x16xf32> -> vector<16x16xf32>
    %42 = arith.addf %41, %5 : vector<16x16xf32>
    %cst_22 = arith.constant dense<0xFF800000> : vector<16xf32>
    %43 = vector.multi_reduction <maximumf>, %42, %cst_22 [1] : vector<16x16xf32> to vector<16xf32>
    %44 = vector.shape_cast %43 : vector<16xf32> to vector<16x1xf32>
    %45 = vector.broadcast %44 : vector<16x1xf32> to vector<16x16xf32>
    %46 = arith.subf %42, %45 : vector<16x16xf32>
    %47 = math.exp %46 : vector<16x16xf32>
    %cst_23 = arith.constant dense<0.000000e+00> : vector<16xf32>
    %48 = vector.multi_reduction <add>, %47, %cst_23 [1] : vector<16x16xf32> to vector<16xf32>
    %49 = vector.shape_cast %48 : vector<16xf32> to vector<16x1xf32>
    %50 = tpu.reciprocal %49 {approx = true} : vector<16x1xf32> -> vector<16x1xf32>
    %51 = vector.broadcast %50 : vector<16x1xf32> to vector<16x16xf32>
    %52 = arith.mulf %47, %51 : vector<16x16xf32>
    %53 = arith.truncf %52 : vector<16x16xf32> to vector<16x16xbf16>
    %54 = vector.extract_strided_slice %38 {offsets = [0, 64], sizes = [16, 8], strides = [1, 1]} : vector<16x96xbf16> to vector<16x8xbf16>
    %cst_24 = arith.constant dense<0.000000e+00> : vector<16x8xf32>
    %55 = tpu.matmul %53, %54, %cst_24 {dimension_numbers = #tpu.dot_dimension_numbers<[1], [0], [0], [1], [0, 0, 1, 1], [], []>} : vector<16x16xbf16>, vector<16x8xbf16>, vector<16x8xf32> -> vector<16x8xf32>
    %56 = vector.extract_strided_slice %38 {offsets = [0, 8], sizes = [16, 8], strides = [1, 1]} : vector<16x96xbf16> to vector<16x8xbf16>
    %57 = vector.extract_strided_slice %38 {offsets = [0, 40], sizes = [16, 8], strides = [1, 1]} : vector<16x96xbf16> to vector<16x8xbf16>
    %cst_25 = arith.constant dense<0.000000e+00> : vector<16x16xf32>
    %58 = tpu.matmul %56, %57, %cst_25 {dimension_numbers = #tpu.dot_dimension_numbers<[1], [1], [0], [0], [0, 0, 1, 0], [], []>} : vector<16x8xbf16>, vector<16x8xbf16>, vector<16x16xf32> -> vector<16x16xf32>
    %59 = arith.addf %58, %5 : vector<16x16xf32>
    %cst_26 = arith.constant dense<0xFF800000> : vector<16xf32>
    %60 = vector.multi_reduction <maximumf>, %59, %cst_26 [1] : vector<16x16xf32> to vector<16xf32>
    %61 = vector.shape_cast %60 : vector<16xf32> to vector<16x1xf32>
    %62 = vector.broadcast %61 : vector<16x1xf32> to vector<16x16xf32>
    %63 = arith.subf %59, %62 : vector<16x16xf32>
    %64 = math.exp %63 : vector<16x16xf32>
    %cst_27 = arith.constant dense<0.000000e+00> : vector<16xf32>
    %65 = vector.multi_reduction <add>, %64, %cst_27 [1] : vector<16x16xf32> to vector<16xf32>
    %66 = vector.shape_cast %65 : vector<16xf32> to vector<16x1xf32>
    %67 = tpu.reciprocal %66 {approx = true} : vector<16x1xf32> -> vector<16x1xf32>
    %68 = vector.broadcast %67 : vector<16x1xf32> to vector<16x16xf32>
    %69 = arith.mulf %64, %68 : vector<16x16xf32>
    %70 = arith.truncf %69 : vector<16x16xf32> to vector<16x16xbf16>
    %71 = vector.extract_strided_slice %38 {offsets = [0, 72], sizes = [16, 8], strides = [1, 1]} : vector<16x96xbf16> to vector<16x8xbf16>
    %cst_28 = arith.constant dense<0.000000e+00> : vector<16x8xf32>
    %72 = tpu.matmul %70, %71, %cst_28 {dimension_numbers = #tpu.dot_dimension_numbers<[1], [0], [0], [1], [0, 0, 1, 1], [], []>} : vector<16x16xbf16>, vector<16x8xbf16>, vector<16x8xf32> -> vector<16x8xf32>
    %73 = vector.extract_strided_slice %38 {offsets = [0, 16], sizes = [16, 8], strides = [1, 1]} : vector<16x96xbf16> to vector<16x8xbf16>
    %74 = vector.extract_strided_slice %38 {offsets = [0, 48], sizes = [16, 8], strides = [1, 1]} : vector<16x96xbf16> to vector<16x8xbf16>
    %cst_29 = arith.constant dense<0.000000e+00> : vector<16x16xf32>
    %75 = tpu.matmul %73, %74, %cst_29 {dimension_numbers = #tpu.dot_dimension_numbers<[1], [1], [0], [0], [0, 0, 1, 0], [], []>} : vector<16x8xbf16>, vector<16x8xbf16>, vector<16x16xf32> -> vector<16x16xf32>
    %76 = arith.addf %75, %5 : vector<16x16xf32>
    %cst_30 = arith.constant dense<0xFF800000> : vector<16xf32>
    %77 = vector.multi_reduction <maximumf>, %76, %cst_30 [1] : vector<16x16xf32> to vector<16xf32>
    %78 = vector.shape_cast %77 : vector<16xf32> to vector<16x1xf32>
    %79 = vector.broadcast %78 : vector<16x1xf32> to vector<16x16xf32>
    %80 = arith.subf %76, %79 : vector<16x16xf32>
    %81 = math.exp %80 : vector<16x16xf32>
    %cst_31 = arith.constant dense<0.000000e+00> : vector<16xf32>
    %82 = vector.multi_reduction <add>, %81, %cst_31 [1] : vector<16x16xf32> to vector<16xf32>
    %83 = vector.shape_cast %82 : vector<16xf32> to vector<16x1xf32>
    %84 = tpu.reciprocal %83 {approx = true} : vector<16x1xf32> -> vector<16x1xf32>
    %85 = vector.broadcast %84 : vector<16x1xf32> to vector<16x16xf32>
    %86 = arith.mulf %81, %85 : vector<16x16xf32>
    %87 = arith.truncf %86 : vector<16x16xf32> to vector<16x16xbf16>
    %88 = vector.extract_strided_slice %38 {offsets = [0, 80], sizes = [16, 8], strides = [1, 1]} : vector<16x96xbf16> to vector<16x8xbf16>
    %cst_32 = arith.constant dense<0.000000e+00> : vector<16x8xf32>
    %89 = tpu.matmul %87, %88, %cst_32 {dimension_numbers = #tpu.dot_dimension_numbers<[1], [0], [0], [1], [0, 0, 1, 1], [], []>} : vector<16x16xbf16>, vector<16x8xbf16>, vector<16x8xf32> -> vector<16x8xf32>
    %90 = vector.extract_strided_slice %38 {offsets = [0, 24], sizes = [16, 8], strides = [1, 1]} : vector<16x96xbf16> to vector<16x8xbf16>
    %91 = vector.extract_strided_slice %38 {offsets = [0, 56], sizes = [16, 8], strides = [1, 1]} : vector<16x96xbf16> to vector<16x8xbf16>
    %cst_33 = arith.constant dense<0.000000e+00> : vector<16x16xf32>
    %92 = tpu.matmul %90, %91, %cst_33 {dimension_numbers = #tpu.dot_dimension_numbers<[1], [1], [0], [0], [0, 0, 1, 0], [], []>} : vector<16x8xbf16>, vector<16x8xbf16>, vector<16x16xf32> -> vector<16x16xf32>
    %93 = arith.addf %92, %5 : vector<16x16xf32>
    %cst_34 = arith.constant dense<0xFF800000> : vector<16xf32>
    %94 = vector.multi_reduction <maximumf>, %93, %cst_34 [1] : vector<16x16xf32> to vector<16xf32>
    %95 = vector.shape_cast %94 : vector<16xf32> to vector<16x1xf32>
    %96 = vector.broadcast %95 : vector<16x1xf32> to vector<16x16xf32>
    %97 = arith.subf %93, %96 : vector<16x16xf32>
    %98 = math.exp %97 : vector<16x16xf32>
    %cst_35 = arith.constant dense<0.000000e+00> : vector<16xf32>
    %99 = vector.multi_reduction <add>, %98, %cst_35 [1] : vector<16x16xf32> to vector<16xf32>
    %100 = vector.shape_cast %99 : vector<16xf32> to vector<16x1xf32>
    %101 = tpu.reciprocal %100 {approx = true} : vector<16x1xf32> -> vector<16x1xf32>
    %102 = vector.broadcast %101 : vector<16x1xf32> to vector<16x16xf32>
    %103 = arith.mulf %98, %102 : vector<16x16xf32>
    %104 = arith.truncf %103 : vector<16x16xf32> to vector<16x16xbf16>
    %105 = vector.extract_strided_slice %38 {offsets = [0, 88], sizes = [16, 8], strides = [1, 1]} : vector<16x96xbf16> to vector<16x8xbf16>
    %cst_36 = arith.constant dense<0.000000e+00> : vector<16x8xf32>
    %106 = tpu.matmul %104, %105, %cst_36 {dimension_numbers = #tpu.dot_dimension_numbers<[1], [0], [0], [1], [0, 0, 1, 1], [], []>} : vector<16x16xbf16>, vector<16x8xbf16>, vector<16x8xf32> -> vector<16x8xf32>
    %107 = tpu.concatenate %55, %72, %89, %106 in 1 : vector<16x8xf32>, vector<16x8xf32>, vector<16x8xf32>, vector<16x8xf32> -> vector<16x32xf32>
    %108 = arith.truncf %107 : vector<16x32xf32> to vector<16x32xbf16>
    %c0_37 = arith.constant 0 : index
    %c0_38 = arith.constant 0 : index
    %c0_39 = arith.constant 0 : index
    %109 = vector.load %arg5[%c0_37, %c0_38, %c0_39] : memref<2x32x32xbf16, #tpu.memory_space<vmem>>, vector<1x32x32xbf16>
    %110 = vector.shape_cast %109 : vector<1x32x32xbf16> to vector<32x32xbf16>
    %cst_40 = arith.constant dense<0.000000e+00> : vector<16x32xf32>
    %111 = tpu.matmul %108, %110, %cst_40 {dimension_numbers = #tpu.dot_dimension_numbers<[1], [0], [0], [1], [0, 0, 1, 1], [], []>} : vector<16x32xbf16>, vector<32x32xbf16>, vector<16x32xf32> -> vector<16x32xf32>
    %112 = arith.addf %0, %111 : vector<16x32xf32>
    %cst_41 = arith.constant dense<0.000000e+00> : vector<16xf32>
    %113 = vector.multi_reduction <add>, %112, %cst_41 [1] : vector<16x32xf32> to vector<16xf32>
    %114 = vector.shape_cast %113 : vector<16xf32> to vector<16x1xf32>
    %cst_42 = arith.constant 3.200000e+01 : f32
    %115 = vector.broadcast %cst_42 : f32 to vector<16x1xf32>
    %116 = arith.divf %114, %115 : vector<16x1xf32>
    %117 = vector.broadcast %116 : vector<16x1xf32> to vector<16x32xf32>
    %118 = arith.subf %112, %117 : vector<16x32xf32>
    %119 = arith.mulf %118, %118 : vector<16x32xf32>
    %cst_43 = arith.constant dense<0.000000e+00> : vector<16xf32>
    %120 = vector.multi_reduction <add>, %119, %cst_43 [1] : vector<16x32xf32> to vector<16xf32>
    %121 = vector.shape_cast %120 : vector<16xf32> to vector<16x1xf32>
    %cst_44 = arith.constant 3.200000e+01 : f32
    %122 = vector.broadcast %cst_44 : f32 to vector<16x1xf32>
    %123 = arith.divf %121, %122 : vector<16x1xf32>
    %124 = vector.broadcast %116 : vector<16x1xf32> to vector<16x32xf32>
    %125 = arith.subf %112, %124 : vector<16x32xf32>
    %cst_45 = arith.constant 9.99999974E-6 : f32
    %126 = vector.broadcast %cst_45 : f32 to vector<16x1xf32>
    %127 = arith.addf %123, %126 : vector<16x1xf32>
    %128 = math.rsqrt %127 : vector<16x1xf32>
    %129 = vector.broadcast %128 : vector<16x1xf32> to vector<16x32xf32>
    %130 = arith.mulf %125, %129 : vector<16x32xf32>
    %131 = arith.truncf %130 : vector<16x32xf32> to vector<16x32xbf16>
    %c0_46 = arith.constant 0 : index
    %c0_47 = arith.constant 0 : index
    %c0_48 = arith.constant 0 : index
    %132 = vector.load %arg6[%c0_46, %c0_47, %c0_48] : memref<2x32x64xbf16, #tpu.memory_space<vmem>>, vector<1x32x64xbf16>
    %133 = vector.shape_cast %132 : vector<1x32x64xbf16> to vector<32x64xbf16>
    %cst_49 = arith.constant dense<0.000000e+00> : vector<16x64xf32>
    %134 = tpu.matmul %131, %133, %cst_49 {dimension_numbers = #tpu.dot_dimension_numbers<[1], [0], [0], [1], [0, 0, 1, 1], [], []>} : vector<16x32xbf16>, vector<32x64xbf16>, vector<16x64xf32> -> vector<16x64xf32>
    %c1_50 = arith.constant 1 : index
    %c0_51 = arith.constant 0 : index
    %135 = vector.load %arg9[%c1_50, %c0_51] : memref<8x128xf32, #tpu.memory_space<vmem>>, vector<1x128xf32>
    %136 = vector.extract_strided_slice %135 {offsets = [0, 0], sizes = [1, 64], strides = [1, 1]} : vector<1x128xf32> to vector<1x64xf32>
    %137 = vector.broadcast %136 : vector<1x64xf32> to vector<16x64xf32>
    %138 = arith.addf %134, %137 : vector<16x64xf32>
    %cst_52 = arith.constant 5.000000e-01 : f32
    %139 = vector.broadcast %cst_52 : f32 to vector<16x64xf32>
    %140 = arith.mulf %139, %138 : vector<16x64xf32>
    %cst_53 = arith.constant 0.707106769 : f32
    %141 = vector.broadcast %cst_53 : f32 to vector<16x64xf32>
    %142 = arith.mulf %138, %141 : vector<16x64xf32>
    %143 = math.erf %142 : vector<16x64xf32>
    %cst_54 = arith.constant 1.000000e+00 : f32
    %144 = vector.broadcast %cst_54 : f32 to vector<16x64xf32>
    %145 = arith.addf %144, %143 : vector<16x64xf32>
    %146 = arith.mulf %140, %145 : vector<16x64xf32>
    %147 = arith.truncf %146 : vector<16x64xf32> to vector<16x64xbf16>
    %c0_55 = arith.constant 0 : index
    %c0_56 = arith.constant 0 : index
    %c0_57 = arith.constant 0 : index
    %148 = vector.load %arg7[%c0_55, %c0_56, %c0_57] : memref<2x64x32xbf16, #tpu.memory_space<vmem>>, vector<1x64x32xbf16>
    %149 = vector.shape_cast %148 : vector<1x64x32xbf16> to vector<64x32xbf16>
    %cst_58 = arith.constant dense<0.000000e+00> : vector<16x32xf32>
    %150 = tpu.matmul %147, %149, %cst_58 {dimension_numbers = #tpu.dot_dimension_numbers<[1], [0], [0], [1], [0, 0, 1, 1], [], []>} : vector<16x64xbf16>, vector<64x32xbf16>, vector<16x32xf32> -> vector<16x32xf32>
    %151 = arith.addf %112, %150 : vector<16x32xf32>
    %c2 = arith.constant 2 : index
    %c0_59 = arith.constant 0 : index
    %152 = vector.load %arg9[%c2, %c0_59] : memref<8x128xf32, #tpu.memory_space<vmem>>, vector<1x128xf32>
    %153 = vector.extract_strided_slice %152 {offsets = [0, 0], sizes = [1, 32], strides = [1, 1]} : vector<1x128xf32> to vector<1x32xf32>
    %154 = vector.broadcast %153 : vector<1x32xf32> to vector<16x32xf32>
    %155 = arith.addf %151, %154 : vector<16x32xf32>
    %cst_60 = arith.constant dense<0.000000e+00> : vector<16xf32>
    %156 = vector.multi_reduction <add>, %155, %cst_60 [1] : vector<16x32xf32> to vector<16xf32>
    %157 = vector.shape_cast %156 : vector<16xf32> to vector<16x1xf32>
    %cst_61 = arith.constant 3.200000e+01 : f32
    %158 = vector.broadcast %cst_61 : f32 to vector<16x1xf32>
    %159 = arith.divf %157, %158 : vector<16x1xf32>
    %160 = vector.broadcast %159 : vector<16x1xf32> to vector<16x32xf32>
    %161 = arith.subf %155, %160 : vector<16x32xf32>
    %162 = arith.mulf %161, %161 : vector<16x32xf32>
    %cst_62 = arith.constant dense<0.000000e+00> : vector<16xf32>
    %163 = vector.multi_reduction <add>, %162, %cst_62 [1] : vector<16x32xf32> to vector<16xf32>
    %164 = vector.shape_cast %163 : vector<16xf32> to vector<16x1xf32>
    %cst_63 = arith.constant 3.200000e+01 : f32
    %165 = vector.broadcast %cst_63 : f32 to vector<16x1xf32>
    %166 = arith.divf %164, %165 : vector<16x1xf32>
    %167 = vector.broadcast %159 : vector<16x1xf32> to vector<16x32xf32>
    %168 = arith.subf %155, %167 : vector<16x32xf32>
    %cst_64 = arith.constant 9.99999974E-6 : f32
    %169 = vector.broadcast %cst_64 : f32 to vector<16x1xf32>
    %170 = arith.addf %166, %169 : vector<16x1xf32>
    %171 = math.rsqrt %170 : vector<16x1xf32>
    %172 = vector.broadcast %171 : vector<16x1xf32> to vector<16x32xf32>
    %173 = arith.mulf %168, %172 : vector<16x32xf32>
    %174 = arith.truncf %173 : vector<16x32xf32> to vector<16x32xbf16>
    %c1_65 = arith.constant 1 : index
    %c0_66 = arith.constant 0 : index
    %c0_67 = arith.constant 0 : index
    %175 = vector.load %arg4[%c1_65, %c0_66, %c0_67] : memref<2x32x96xbf16, #tpu.memory_space<vmem>>, vector<1x32x96xbf16>
    %176 = vector.shape_cast %175 : vector<1x32x96xbf16> to vector<32x96xbf16>
    %cst_68 = arith.constant dense<0.000000e+00> : vector<16x96xf32>
    %177 = tpu.matmul %174, %176, %cst_68 {dimension_numbers = #tpu.dot_dimension_numbers<[1], [0], [0], [1], [0, 0, 1, 1], [], []>} : vector<16x32xbf16>, vector<32x96xbf16>, vector<16x96xf32> -> vector<16x96xf32>
    %c3 = arith.constant 3 : index
    %c0_69 = arith.constant 0 : index
    %178 = vector.load %arg9[%c3, %c0_69] : memref<8x128xf32, #tpu.memory_space<vmem>>, vector<1x128xf32>
    %179 = vector.extract_strided_slice %178 {offsets = [0, 0], sizes = [1, 96], strides = [1, 1]} : vector<1x128xf32> to vector<1x96xf32>
    %180 = vector.broadcast %179 : vector<1x96xf32> to vector<16x96xf32>
    %181 = arith.addf %177, %180 : vector<16x96xf32>
    %182 = arith.truncf %181 : vector<16x96xf32> to vector<16x96xbf16>
    %cst_70 = arith.constant dense<0.000000e+00> : vector<16x96xf32>
    %183 = tpu.matmul %182, %6, %cst_70 {dimension_numbers = #tpu.dot_dimension_numbers<[1], [0], [0], [1], [0, 0, 1, 1], [], []>} : vector<16x96xbf16>, vector<96x96xbf16>, vector<16x96xf32> -> vector<16x96xf32>
    %184 = arith.mulf %181, %2 : vector<16x96xf32>
    %185 = arith.mulf %183, %4 : vector<16x96xf32>
    %186 = arith.addf %184, %185 : vector<16x96xf32>
    %187 = arith.truncf %186 : vector<16x96xf32> to vector<16x96xbf16>
    %188 = vector.extract_strided_slice %187 {offsets = [0, 0], sizes = [16, 8], strides = [1, 1]} : vector<16x96xbf16> to vector<16x8xbf16>
    %189 = vector.extract_strided_slice %187 {offsets = [0, 32], sizes = [16, 8], strides = [1, 1]} : vector<16x96xbf16> to vector<16x8xbf16>
    %cst_71 = arith.constant dense<0.000000e+00> : vector<16x16xf32>
    %190 = tpu.matmul %188, %189, %cst_71 {dimension_numbers = #tpu.dot_dimension_numbers<[1], [1], [0], [0], [0, 0, 1, 0], [], []>} : vector<16x8xbf16>, vector<16x8xbf16>, vector<16x16xf32> -> vector<16x16xf32>
    %191 = arith.addf %190, %5 : vector<16x16xf32>
    %cst_72 = arith.constant dense<0xFF800000> : vector<16xf32>
    %192 = vector.multi_reduction <maximumf>, %191, %cst_72 [1] : vector<16x16xf32> to vector<16xf32>
    %193 = vector.shape_cast %192 : vector<16xf32> to vector<16x1xf32>
    %194 = vector.broadcast %193 : vector<16x1xf32> to vector<16x16xf32>
    %195 = arith.subf %191, %194 : vector<16x16xf32>
    %196 = math.exp %195 : vector<16x16xf32>
    %cst_73 = arith.constant dense<0.000000e+00> : vector<16xf32>
    %197 = vector.multi_reduction <add>, %196, %cst_73 [1] : vector<16x16xf32> to vector<16xf32>
    %198 = vector.shape_cast %197 : vector<16xf32> to vector<16x1xf32>
    %199 = tpu.reciprocal %198 {approx = true} : vector<16x1xf32> -> vector<16x1xf32>
    %200 = vector.broadcast %199 : vector<16x1xf32> to vector<16x16xf32>
    %201 = arith.mulf %196, %200 : vector<16x16xf32>
    %202 = arith.truncf %201 : vector<16x16xf32> to vector<16x16xbf16>
    %203 = vector.extract_strided_slice %187 {offsets = [0, 64], sizes = [16, 8], strides = [1, 1]} : vector<16x96xbf16> to vector<16x8xbf16>
    %cst_74 = arith.constant dense<0.000000e+00> : vector<16x8xf32>
    %204 = tpu.matmul %202, %203, %cst_74 {dimension_numbers = #tpu.dot_dimension_numbers<[1], [0], [0], [1], [0, 0, 1, 1], [], []>} : vector<16x16xbf16>, vector<16x8xbf16>, vector<16x8xf32> -> vector<16x8xf32>
    %205 = vector.extract_strided_slice %187 {offsets = [0, 8], sizes = [16, 8], strides = [1, 1]} : vector<16x96xbf16> to vector<16x8xbf16>
    %206 = vector.extract_strided_slice %187 {offsets = [0, 40], sizes = [16, 8], strides = [1, 1]} : vector<16x96xbf16> to vector<16x8xbf16>
    %cst_75 = arith.constant dense<0.000000e+00> : vector<16x16xf32>
    %207 = tpu.matmul %205, %206, %cst_75 {dimension_numbers = #tpu.dot_dimension_numbers<[1], [1], [0], [0], [0, 0, 1, 0], [], []>} : vector<16x8xbf16>, vector<16x8xbf16>, vector<16x16xf32> -> vector<16x16xf32>
    %208 = arith.addf %207, %5 : vector<16x16xf32>
    %cst_76 = arith.constant dense<0xFF800000> : vector<16xf32>
    %209 = vector.multi_reduction <maximumf>, %208, %cst_76 [1] : vector<16x16xf32> to vector<16xf32>
    %210 = vector.shape_cast %209 : vector<16xf32> to vector<16x1xf32>
    %211 = vector.broadcast %210 : vector<16x1xf32> to vector<16x16xf32>
    %212 = arith.subf %208, %211 : vector<16x16xf32>
    %213 = math.exp %212 : vector<16x16xf32>
    %cst_77 = arith.constant dense<0.000000e+00> : vector<16xf32>
    %214 = vector.multi_reduction <add>, %213, %cst_77 [1] : vector<16x16xf32> to vector<16xf32>
    %215 = vector.shape_cast %214 : vector<16xf32> to vector<16x1xf32>
    %216 = tpu.reciprocal %215 {approx = true} : vector<16x1xf32> -> vector<16x1xf32>
    %217 = vector.broadcast %216 : vector<16x1xf32> to vector<16x16xf32>
    %218 = arith.mulf %213, %217 : vector<16x16xf32>
    %219 = arith.truncf %218 : vector<16x16xf32> to vector<16x16xbf16>
    %220 = vector.extract_strided_slice %187 {offsets = [0, 72], sizes = [16, 8], strides = [1, 1]} : vector<16x96xbf16> to vector<16x8xbf16>
    %cst_78 = arith.constant dense<0.000000e+00> : vector<16x8xf32>
    %221 = tpu.matmul %219, %220, %cst_78 {dimension_numbers = #tpu.dot_dimension_numbers<[1], [0], [0], [1], [0, 0, 1, 1], [], []>} : vector<16x16xbf16>, vector<16x8xbf16>, vector<16x8xf32> -> vector<16x8xf32>
    %222 = vector.extract_strided_slice %187 {offsets = [0, 16], sizes = [16, 8], strides = [1, 1]} : vector<16x96xbf16> to vector<16x8xbf16>
    %223 = vector.extract_strided_slice %187 {offsets = [0, 48], sizes = [16, 8], strides = [1, 1]} : vector<16x96xbf16> to vector<16x8xbf16>
    %cst_79 = arith.constant dense<0.000000e+00> : vector<16x16xf32>
    %224 = tpu.matmul %222, %223, %cst_79 {dimension_numbers = #tpu.dot_dimension_numbers<[1], [1], [0], [0], [0, 0, 1, 0], [], []>} : vector<16x8xbf16>, vector<16x8xbf16>, vector<16x16xf32> -> vector<16x16xf32>
    %225 = arith.addf %224, %5 : vector<16x16xf32>
    %cst_80 = arith.constant dense<0xFF800000> : vector<16xf32>
    %226 = vector.multi_reduction <maximumf>, %225, %cst_80 [1] : vector<16x16xf32> to vector<16xf32>
    %227 = vector.shape_cast %226 : vector<16xf32> to vector<16x1xf32>
    %228 = vector.broadcast %227 : vector<16x1xf32> to vector<16x16xf32>
    %229 = arith.subf %225, %228 : vector<16x16xf32>
    %230 = math.exp %229 : vector<16x16xf32>
    %cst_81 = arith.constant dense<0.000000e+00> : vector<16xf32>
    %231 = vector.multi_reduction <add>, %230, %cst_81 [1] : vector<16x16xf32> to vector<16xf32>
    %232 = vector.shape_cast %231 : vector<16xf32> to vector<16x1xf32>
    %233 = tpu.reciprocal %232 {approx = true} : vector<16x1xf32> -> vector<16x1xf32>
    %234 = vector.broadcast %233 : vector<16x1xf32> to vector<16x16xf32>
    %235 = arith.mulf %230, %234 : vector<16x16xf32>
    %236 = arith.truncf %235 : vector<16x16xf32> to vector<16x16xbf16>
    %237 = vector.extract_strided_slice %187 {offsets = [0, 80], sizes = [16, 8], strides = [1, 1]} : vector<16x96xbf16> to vector<16x8xbf16>
    %cst_82 = arith.constant dense<0.000000e+00> : vector<16x8xf32>
    %238 = tpu.matmul %236, %237, %cst_82 {dimension_numbers = #tpu.dot_dimension_numbers<[1], [0], [0], [1], [0, 0, 1, 1], [], []>} : vector<16x16xbf16>, vector<16x8xbf16>, vector<16x8xf32> -> vector<16x8xf32>
    %239 = vector.extract_strided_slice %187 {offsets = [0, 24], sizes = [16, 8], strides = [1, 1]} : vector<16x96xbf16> to vector<16x8xbf16>
    %240 = vector.extract_strided_slice %187 {offsets = [0, 56], sizes = [16, 8], strides = [1, 1]} : vector<16x96xbf16> to vector<16x8xbf16>
    %cst_83 = arith.constant dense<0.000000e+00> : vector<16x16xf32>
    %241 = tpu.matmul %239, %240, %cst_83 {dimension_numbers = #tpu.dot_dimension_numbers<[1], [1], [0], [0], [0, 0, 1, 0], [], []>} : vector<16x8xbf16>, vector<16x8xbf16>, vector<16x16xf32> -> vector<16x16xf32>
    %242 = arith.addf %241, %5 : vector<16x16xf32>
    %cst_84 = arith.constant dense<0xFF800000> : vector<16xf32>
    %243 = vector.multi_reduction <maximumf>, %242, %cst_84 [1] : vector<16x16xf32> to vector<16xf32>
    %244 = vector.shape_cast %243 : vector<16xf32> to vector<16x1xf32>
    %245 = vector.broadcast %244 : vector<16x1xf32> to vector<16x16xf32>
    %246 = arith.subf %242, %245 : vector<16x16xf32>
    %247 = math.exp %246 : vector<16x16xf32>
    %cst_85 = arith.constant dense<0.000000e+00> : vector<16xf32>
    %248 = vector.multi_reduction <add>, %247, %cst_85 [1] : vector<16x16xf32> to vector<16xf32>
    %249 = vector.shape_cast %248 : vector<16xf32> to vector<16x1xf32>
    %250 = tpu.reciprocal %249 {approx = true} : vector<16x1xf32> -> vector<16x1xf32>
    %251 = vector.broadcast %250 : vector<16x1xf32> to vector<16x16xf32>
    %252 = arith.mulf %247, %251 : vector<16x16xf32>
    %253 = arith.truncf %252 : vector<16x16xf32> to vector<16x16xbf16>
    %254 = vector.extract_strided_slice %187 {offsets = [0, 88], sizes = [16, 8], strides = [1, 1]} : vector<16x96xbf16> to vector<16x8xbf16>
    %cst_86 = arith.constant dense<0.000000e+00> : vector<16x8xf32>
    %255 = tpu.matmul %253, %254, %cst_86 {dimension_numbers = #tpu.dot_dimension_numbers<[1], [0], [0], [1], [0, 0, 1, 1], [], []>} : vector<16x16xbf16>, vector<16x8xbf16>, vector<16x8xf32> -> vector<16x8xf32>
    %256 = tpu.concatenate %204, %221, %238, %255 in 1 : vector<16x8xf32>, vector<16x8xf32>, vector<16x8xf32>, vector<16x8xf32> -> vector<16x32xf32>
    %257 = arith.truncf %256 : vector<16x32xf32> to vector<16x32xbf16>
    %c1_87 = arith.constant 1 : index
    %c0_88 = arith.constant 0 : index
    %c0_89 = arith.constant 0 : index
    %258 = vector.load %arg5[%c1_87, %c0_88, %c0_89] : memref<2x32x32xbf16, #tpu.memory_space<vmem>>, vector<1x32x32xbf16>
    %259 = vector.shape_cast %258 : vector<1x32x32xbf16> to vector<32x32xbf16>
    %cst_90 = arith.constant dense<0.000000e+00> : vector<16x32xf32>
    %260 = tpu.matmul %257, %259, %cst_90 {dimension_numbers = #tpu.dot_dimension_numbers<[1], [0], [0], [1], [0, 0, 1, 1], [], []>} : vector<16x32xbf16>, vector<32x32xbf16>, vector<16x32xf32> -> vector<16x32xf32>
    %261 = arith.addf %155, %260 : vector<16x32xf32>
    %cst_91 = arith.constant dense<0.000000e+00> : vector<16xf32>
    %262 = vector.multi_reduction <add>, %261, %cst_91 [1] : vector<16x32xf32> to vector<16xf32>
    %263 = vector.shape_cast %262 : vector<16xf32> to vector<16x1xf32>
    %cst_92 = arith.constant 3.200000e+01 : f32
    %264 = vector.broadcast %cst_92 : f32 to vector<16x1xf32>
    %265 = arith.divf %263, %264 : vector<16x1xf32>
    %266 = vector.broadcast %265 : vector<16x1xf32> to vector<16x32xf32>
    %267 = arith.subf %261, %266 : vector<16x32xf32>
    %268 = arith.mulf %267, %267 : vector<16x32xf32>
    %cst_93 = arith.constant dense<0.000000e+00> : vector<16xf32>
    %269 = vector.multi_reduction <add>, %268, %cst_93 [1] : vector<16x32xf32> to vector<16xf32>
    %270 = vector.shape_cast %269 : vector<16xf32> to vector<16x1xf32>
    %cst_94 = arith.constant 3.200000e+01 : f32
    %271 = vector.broadcast %cst_94 : f32 to vector<16x1xf32>
    %272 = arith.divf %270, %271 : vector<16x1xf32>
    %273 = vector.broadcast %265 : vector<16x1xf32> to vector<16x32xf32>
    %274 = arith.subf %261, %273 : vector<16x32xf32>
    %cst_95 = arith.constant 9.99999974E-6 : f32
    %275 = vector.broadcast %cst_95 : f32 to vector<16x1xf32>
    %276 = arith.addf %272, %275 : vector<16x1xf32>
    %277 = math.rsqrt %276 : vector<16x1xf32>
    %278 = vector.broadcast %277 : vector<16x1xf32> to vector<16x32xf32>
    %279 = arith.mulf %274, %278 : vector<16x32xf32>
    %280 = arith.truncf %279 : vector<16x32xf32> to vector<16x32xbf16>
    %c1_96 = arith.constant 1 : index
    %c0_97 = arith.constant 0 : index
    %c0_98 = arith.constant 0 : index
    %281 = vector.load %arg6[%c1_96, %c0_97, %c0_98] : memref<2x32x64xbf16, #tpu.memory_space<vmem>>, vector<1x32x64xbf16>
    %282 = vector.shape_cast %281 : vector<1x32x64xbf16> to vector<32x64xbf16>
    %cst_99 = arith.constant dense<0.000000e+00> : vector<16x64xf32>
    %283 = tpu.matmul %280, %282, %cst_99 {dimension_numbers = #tpu.dot_dimension_numbers<[1], [0], [0], [1], [0, 0, 1, 1], [], []>} : vector<16x32xbf16>, vector<32x64xbf16>, vector<16x64xf32> -> vector<16x64xf32>
    %c4 = arith.constant 4 : index
    %c0_100 = arith.constant 0 : index
    %284 = vector.load %arg9[%c4, %c0_100] : memref<8x128xf32, #tpu.memory_space<vmem>>, vector<1x128xf32>
    %285 = vector.extract_strided_slice %284 {offsets = [0, 0], sizes = [1, 64], strides = [1, 1]} : vector<1x128xf32> to vector<1x64xf32>
    %286 = vector.broadcast %285 : vector<1x64xf32> to vector<16x64xf32>
    %287 = arith.addf %283, %286 : vector<16x64xf32>
    %cst_101 = arith.constant 5.000000e-01 : f32
    %288 = vector.broadcast %cst_101 : f32 to vector<16x64xf32>
    %289 = arith.mulf %288, %287 : vector<16x64xf32>
    %cst_102 = arith.constant 0.707106769 : f32
    %290 = vector.broadcast %cst_102 : f32 to vector<16x64xf32>
    %291 = arith.mulf %287, %290 : vector<16x64xf32>
    %292 = math.erf %291 : vector<16x64xf32>
    %cst_103 = arith.constant 1.000000e+00 : f32
    %293 = vector.broadcast %cst_103 : f32 to vector<16x64xf32>
    %294 = arith.addf %293, %292 : vector<16x64xf32>
    %295 = arith.mulf %289, %294 : vector<16x64xf32>
    %296 = arith.truncf %295 : vector<16x64xf32> to vector<16x64xbf16>
    %c1_104 = arith.constant 1 : index
    %c0_105 = arith.constant 0 : index
    %c0_106 = arith.constant 0 : index
    %297 = vector.load %arg7[%c1_104, %c0_105, %c0_106] : memref<2x64x32xbf16, #tpu.memory_space<vmem>>, vector<1x64x32xbf16>
    %298 = vector.shape_cast %297 : vector<1x64x32xbf16> to vector<64x32xbf16>
    %cst_107 = arith.constant dense<0.000000e+00> : vector<16x32xf32>
    %299 = tpu.matmul %296, %298, %cst_107 {dimension_numbers = #tpu.dot_dimension_numbers<[1], [0], [0], [1], [0, 0, 1, 1], [], []>} : vector<16x64xbf16>, vector<64x32xbf16>, vector<16x32xf32> -> vector<16x32xf32>
    %300 = arith.addf %261, %299 : vector<16x32xf32>
    %c5 = arith.constant 5 : index
    %c0_108 = arith.constant 0 : index
    %301 = vector.load %arg9[%c5, %c0_108] : memref<8x128xf32, #tpu.memory_space<vmem>>, vector<1x128xf32>
    %302 = vector.extract_strided_slice %301 {offsets = [0, 0], sizes = [1, 32], strides = [1, 1]} : vector<1x128xf32> to vector<1x32xf32>
    %303 = vector.broadcast %302 : vector<1x32xf32> to vector<16x32xf32>
    %304 = arith.addf %300, %303 : vector<16x32xf32>
    %cst_109 = arith.constant dense<0.000000e+00> : vector<16xf32>
    %305 = vector.multi_reduction <add>, %304, %cst_109 [1] : vector<16x32xf32> to vector<16xf32>
    %306 = vector.shape_cast %305 : vector<16xf32> to vector<16x1xf32>
    %cst_110 = arith.constant 3.200000e+01 : f32
    %307 = vector.broadcast %cst_110 : f32 to vector<16x1xf32>
    %308 = arith.divf %306, %307 : vector<16x1xf32>
    %309 = vector.broadcast %308 : vector<16x1xf32> to vector<16x32xf32>
    %310 = arith.subf %304, %309 : vector<16x32xf32>
    %311 = arith.mulf %310, %310 : vector<16x32xf32>
    %cst_111 = arith.constant dense<0.000000e+00> : vector<16xf32>
    %312 = vector.multi_reduction <add>, %311, %cst_111 [1] : vector<16x32xf32> to vector<16xf32>
    %313 = vector.shape_cast %312 : vector<16xf32> to vector<16x1xf32>
    %cst_112 = arith.constant 3.200000e+01 : f32
    %314 = vector.broadcast %cst_112 : f32 to vector<16x1xf32>
    %315 = arith.divf %313, %314 : vector<16x1xf32>
    %316 = vector.broadcast %308 : vector<16x1xf32> to vector<16x32xf32>
    %317 = arith.subf %304, %316 : vector<16x32xf32>
    %cst_113 = arith.constant 9.99999974E-6 : f32
    %318 = vector.broadcast %cst_113 : f32 to vector<16x1xf32>
    %319 = arith.addf %315, %318 : vector<16x1xf32>
    %320 = math.rsqrt %319 : vector<16x1xf32>
    %321 = vector.broadcast %320 : vector<16x1xf32> to vector<16x32xf32>
    %322 = arith.mulf %317, %321 : vector<16x32xf32>
    %323 = arith.truncf %322 : vector<16x32xf32> to vector<16x32xbf16>
    %c0_114 = arith.constant 0 : index
    %c0_115 = arith.constant 0 : index
    %324 = vector.load %arg8[%c0_114, %c0_115] : memref<32x128xbf16, #tpu.memory_space<vmem>>, vector<32x128xbf16>
    %cst_116 = arith.constant dense<0.000000e+00> : vector<16x128xf32>
    %325 = tpu.matmul %323, %324, %cst_116 {dimension_numbers = #tpu.dot_dimension_numbers<[1], [0], [0], [1], [0, 0, 1, 1], [], []>} : vector<16x32xbf16>, vector<32x128xbf16>, vector<16x128xf32> -> vector<16x128xf32>
    %c6 = arith.constant 6 : index
    %c0_117 = arith.constant 0 : index
    %326 = vector.load %arg9[%c6, %c0_117] : memref<8x128xf32, #tpu.memory_space<vmem>>, vector<1x128xf32>
    %327 = vector.broadcast %326 : vector<1x128xf32> to vector<16x128xf32>
    %328 = arith.addf %325, %327 : vector<16x128xf32>
    %c0_118 = arith.constant 0 : index
    %c0_119 = arith.constant 0 : index
    %329 = vector.load %arg10[%c0_118, %c0_119] : memref<16x128xf32, #tpu.memory_space<vmem>>, vector<16x128xf32>
    tpu.vector_store %arg10[%c0_118, %c0_119], %328 {strides = array<i32>} : memref<16x128xf32, #tpu.memory_space<vmem>>, vector<16x128xf32>,
    return
  }
}

</mosaic_0001>

<llo_original>
// kernel: tpu_custom_call.1
$region0: #{tpu_custom_call.1}
  #allocation0 [shape = 'u32[]', space=smem, size = 0x4, offset = 0x4, fixed_abs, tag = 'smem constant byte address 0x4 - core index']
  #allocation1 [shape = 'u32[72,128]{1,0:T(1,128)}', space=vmem, size = 0x9000, scoped, tag = 'internal scratch']
  %s0 = inlined_call_operand.vmem [shape: f32[16,32], index: 0, kind: input, shape index: {}]
  %s1 = inlined_call_operand.vmem [shape: f32[2,16,96], index: 1, kind: input, shape index: {}]
  %s2 = inlined_call_operand.hbm [shape: f32[16,16], index: 2, kind: input, shape index: {}]
  %s3 = inlined_call_operand.vmem [shape: bf16[96,96], index: 3, kind: input, shape index: {}]
  %s4 = inlined_call_operand.hbm [shape: bf16[2,32,96], index: 4, kind: input, shape index: {}]
  %s5 = inlined_call_operand.hbm [shape: bf16[2,32,32], index: 5, kind: input, shape index: {}]
  %s6 = inlined_call_operand.hbm [shape: bf16[2,32,64], index: 6, kind: input, shape index: {}]
  %s7 = inlined_call_operand.vmem [shape: bf16[2,64,32], index: 7, kind: input, shape index: {}]
  %s8 = inlined_call_operand.hbm [shape: bf16[32,128], index: 8, kind: input, shape index: {}]
  %s9 = inlined_call_operand.hbm [shape: f32[8,128], index: 9, kind: input, shape index: {}]
  %s10 = inlined_call_operand.hbm [shape: f32[16,128], index: 10, kind: output, shape index: {}]
  %s11 = sld [smem:[#allocation0]]
  $region74: #{tpu_custom_call.1} parent=0
    _
  %s13 = ssub.s32 1, %s11
  %s14 = scalar_select 0, %s13, %s11
  $region1: #{tpu_custom_call.1} parent=0
    #allocation2 [shape = 'u8[8192]{0}', space=vmem, size = 0x2000, scoped, tag = 'input window, operand 2, single buffered']
    #allocation3 [shape = 's32[1]{0}', space=sflag, size = 0x4, scoped, tag = 'scoped memory for tpu_custom_call.1']
    #allocation4 [shape = 's32[1]{0}', space=sflag, size = 0x4, scoped, tag = 'scoped memory for tpu_custom_call.1']
    #allocation5 [shape = 'u8[16384]{0}', space=vmem, size = 0x4000, scoped, tag = 'input window, operand 4, single buffered']
    #allocation6 [shape = 's32[1]{0}', space=sflag, size = 0x4, scoped, tag = 'scoped memory for tpu_custom_call.1']
    #allocation7 [shape = 'u8[16384]{0}', space=vmem, size = 0x4000, scoped, tag = 'input window, operand 5, single buffered']
    #allocation8 [shape = 'u8[16384]{0}', space=vmem, size = 0x4000, scoped, tag = 'input window, operand 6, single buffered']
    #allocation9 [shape = 's32[1]{0}', space=sflag, size = 0x4, scoped, tag = 'scoped memory for tpu_custom_call.1']
    #allocation10 [shape = 'u8[8192]{0}', space=vmem, size = 0x2000, scoped, tag = 'input window, operand 8, single buffered']
    #allocation11 [shape = 'u8[4096]{0}', space=vmem, size = 0x1000, scoped, tag = 'input window, operand 9, single buffered']
    #allocation12 [shape = 's32[1]{0}', space=sflag, size = 0x4, scoped, tag = 'scoped memory for tpu_custom_call.1']
    #allocation13 [shape = 'u8[8192]{0}', space=vmem, size = 0x2000, scoped, tag = 'output window, operand 0, single buffered']
    %15 = vsyncpa [#allocation3], 0
    %16 = vsyncpa [#allocation6], 0
    %17 = vsyncpa [#allocation9], 0
    %18 = vsyncpa [#allocation12], 0
    %19 = vsyncpa [#allocation4], 0
    // Predicated region
    $region2: #{tpu_custom_call.1} parent=1 // pred_check
      _
    $region3: #{tpu_custom_call.1} parent=1 // pred_check_branch
      %21 = sbr.rel (0) target = $region5
    $region4: #{tpu_custom_call.1} parent=1 // pred_region
      _
    $region5: #{tpu_custom_call.1} parent=1 // pred_fallthru
      _
    // Predicated region
    $region6: #{tpu_custom_call.1} parent=1 // pred_check
      _
    $region7: #{tpu_custom_call.1} parent=1 // pred_check_branch
      %23 = sbr.rel (0) target = $region9
    $region8: #{tpu_custom_call.1} parent=1 // pred_region
      _
    $region9: #{tpu_custom_call.1} parent=1 // pred_fallthru
      _
    // Predicated region
    $region10: #{tpu_custom_call.1} parent=1 // pred_check
      _
    $region11: #{tpu_custom_call.1} parent=1 // pred_check_branch
      %25 = sbr.rel (0) target = $region13
    $region12: #{tpu_custom_call.1} parent=1 // pred_region
      %27 = vsyncadd [#allocation3], 0
      %s28 = sshll.u32 %s2, 4
      %s29 = int_to_ptr.hbm [resolvable:$true] %s28
      %s30 = sshll.u32 [#allocation2], 4
      %s31 = int_to_ptr.vmem [resolvable:$true] %s30
      %36 = dma.hbm_to_vmem [thread:$0]  %s29, 256, %s31, [#allocation3], 128, 128, 8
    $region13: #{tpu_custom_call.1} parent=1 // pred_fallthru
      _
    // Predicated region
    $region14: #{tpu_custom_call.1} parent=1 // pred_check
      _
    $region15: #{tpu_custom_call.1} parent=1 // pred_check_branch
      %38 = sbr.rel (0) target = $region17
    $region16: #{tpu_custom_call.1} parent=1 // pred_region
      _
    $region17: #{tpu_custom_call.1} parent=1 // pred_fallthru
      _
    // Predicated region
    $region18: #{tpu_custom_call.1} parent=1 // pred_check
      _
    $region19: #{tpu_custom_call.1} parent=1 // pred_check_branch
      %40 = sbr.rel (0) target = $region21
    $region20: #{tpu_custom_call.1} parent=1 // pred_region
      %42 = vsyncadd [#allocation6], 0
      %s43 = sshll.u32 %s4, 4
      %s44 = int_to_ptr.hbm [resolvable:$true] %s43
      %s45 = sshll.u32 [#allocation5], 4
      %s46 = int_to_ptr.vmem [resolvable:$true] %s45
      %51 = dma.hbm_to_vmem [thread:$0]  %s44, 512, %s46, [#allocation6], 64, 64, 4
    $region21: #{tpu_custom_call.1} parent=1 // pred_fallthru
      _
    // Predicated region
    $region22: #{tpu_custom_call.1} parent=1 // pred_check
      _
    $region23: #{tpu_custom_call.1} parent=1 // pred_check_branch
      %53 = sbr.rel (0) target = $region25
    $region24: #{tpu_custom_call.1} parent=1 // pred_region
      %55 = vsyncadd [#allocation6], 0
      %s56 = sshll.u32 %s5, 4
      %s57 = int_to_ptr.hbm [resolvable:$true] %s56
      %s58 = sshll.u32 [#allocation7], 4
      %s59 = int_to_ptr.vmem [resolvable:$true] %s58
      %64 = dma.hbm_to_vmem [thread:$0]  %s57, 512, %s59, [#allocation6], 64, 64, 4
    $region25: #{tpu_custom_call.1} parent=1 // pred_fallthru
      _
    // Predicated region
    $region26: #{tpu_custom_call.1} parent=1 // pred_check
      _
    $region27: #{tpu_custom_call.1} parent=1 // pred_check_branch
      %66 = sbr.rel (0) target = $region29
    $region28: #{tpu_custom_call.1} parent=1 // pred_region
      %68 = vsyncadd [#allocation9], 0
      %s69 = sshll.u32 %s6, 4
      %s70 = int_to_ptr.hbm [resolvable:$true] %s69
      %s71 = sshll.u32 [#allocation8], 4
      %s72 = int_to_ptr.vmem [resolvable:$true] %s71
      %77 = dma.hbm_to_vmem [thread:$0]  %s70, 512, %s72, [#allocation9], 64, 64, 4
    $region29: #{tpu_custom_call.1} parent=1 // pred_fallthru
      _
    // Predicated region
    $region30: #{tpu_custom_call.1} parent=1 // pred_check
      _
    $region31: #{tpu_custom_call.1} parent=1 // pred_check_branch
      %79 = sbr.rel (0) target = $region33
    $region32: #{tpu_custom_call.1} parent=1 // pred_region
      _
    $region33: #{tpu_custom_call.1} parent=1 // pred_fallthru
      _
    // Predicated region
    $region34: #{tpu_custom_call.1} parent=1 // pred_check
      _
    $region35: #{tpu_custom_call.1} parent=1 // pred_check_branch
      %81 = sbr.rel (0) target = $region37
    $region36: #{tpu_custom_call.1} parent=1 // pred_region
      %83 = vsyncadd [#allocation9], 0
      %s84 = sshll.u32 %s8, 4
      %s85 = int_to_ptr.hbm [resolvable:$true] %s84
      %s86 = sshll.u32 [#allocation10], 4
      %s87 = int_to_ptr.vmem [resolvable:$true] %s86
      %92 = dma.hbm_to_vmem [thread:$0]  %s85, 256, %s87, [#allocation9], 64, 64, 4
    $region37: #{tpu_custom_call.1} parent=1 // pred_fallthru
      _
    // Predicated region
    $region38: #{tpu_custom_call.1} parent=1 // pred_check
      _
    $region39: #{tpu_custom_call.1} parent=1 // pred_check_branch
      %94 = sbr.rel (0) target = $region41
    $region40: #{tpu_custom_call.1} parent=1 // pred_region
      %96 = vsyncadd [#allocation12], 0
      %s98 = sshll.u32 %s9, 4
      %s99 = int_to_ptr.hbm [resolvable:$true] %s98
      %s100 = sshll.u32 [#allocation11], 4
      %s101 = int_to_ptr.vmem [resolvable:$true] %s100
      %103 = dma.hbm_to_vmem [thread:$0]  %s99, 128, %s101, [#allocation12]
    $region41: #{tpu_custom_call.1} parent=1 // pred_fallthru
      _
    // Predicated region
    $region42: #{tpu_custom_call.1} parent=1 // pred_check
      _
    $region43: #{tpu_custom_call.1} parent=1 // pred_check_branch
      %105 = sbr.rel (0) target = $region45
    $region44: #{tpu_custom_call.1} parent=1 // pred_region
      %107 = dma.done [#allocation3], 256
    $region45: #{tpu_custom_call.1} parent=1 // pred_fallthru
      _
    // Predicated region
    $region46: #{tpu_custom_call.1} parent=1 // pred_check
      _
    $region47: #{tpu_custom_call.1} parent=1 // pred_check_branch
      %109 = sbr.rel (0) target = $region49
    $region48: #{tpu_custom_call.1} parent=1 // pred_region
      %111 = dma.done [#allocation6], 512
    $region49: #{tpu_custom_call.1} parent=1 // pred_fallthru
      _
    // Predicated region
    $region50: #{tpu_custom_call.1} parent=1 // pred_check
      _
    $region51: #{tpu_custom_call.1} parent=1 // pred_check_branch
      %113 = sbr.rel (0) target = $region53
    $region52: #{tpu_custom_call.1} parent=1 // pred_region
      %115 = dma.done [#allocation6], 512
    $region53: #{tpu_custom_call.1} parent=1 // pred_fallthru
      _
    // Predicated region
    $region54: #{tpu_custom_call.1} parent=1 // pred_check
      _
    $region55: #{tpu_custom_call.1} parent=1 // pred_check_branch
      %117 = sbr.rel (0) target = $region57
    $region56: #{tpu_custom_call.1} parent=1 // pred_region
      %119 = dma.done [#allocation9], 512
    $region57: #{tpu_custom_call.1} parent=1 // pred_fallthru
      _
    // Predicated region
    $region58: #{tpu_custom_call.1} parent=1 // pred_check
      _
    $region59: #{tpu_custom_call.1} parent=1 // pred_check_branch
      %121 = sbr.rel (0) target = $region61
    $region60: #{tpu_custom_call.1} parent=1 // pred_region
      %123 = dma.done [#allocation9], 256
    $region61: #{tpu_custom_call.1} parent=1 // pred_fallthru
      _
    // Predicated region
    $region62: #{tpu_custom_call.1} parent=1 // pred_check
      _
    $region63: #{tpu_custom_call.1} parent=1 // pred_check_branch
      %125 = sbr.rel (0) target = $region65
    $region64: #{tpu_custom_call.1} parent=1 // pred_region
      %127 = dma.done [#allocation12], 128
    $region65: #{tpu_custom_call.1} parent=1 // pred_fallthru
      _
    %v129 = vld [vmem:[%s0] sm:$0xff]
    %v130 = vld [vmem:[%s0 + $0x8] sm:$0xff]
    %v131 = vld [vmem:[%s1] sm:$0xff]
    %v132 = vld [vmem:[%s1 + $0x8] sm:$0xff]
    %s133 = scalar_lea.vmem %s1, 16
    %v134 = vld [vmem:[%s133] sm:$0xff]
    %v135 = vld [vmem:[%s133 + $0x8] sm:$0xff]
    %v136 = vld [vmem:[#allocation2] sm:$0xff]
    %v137 = vld [vmem:[#allocation2 + $0x8] sm:$0xff]
    %v138 = vld [vmem:[%s3] sm:$0xf]
    %v139 = vld [vmem:[%s3 + $0x4] sm:$0xf]
    %v140 = vld [vmem:[%s3 + $0x8] sm:$0xf]
    %v141 = vld [vmem:[%s3 + $0xc] sm:$0xf]
    %v142 = vld [vmem:[%s3 + $0x10] sm:$0xf]
    %v143 = vld [vmem:[%s3 + $0x14] sm:$0xf]
    %v144 = vld [vmem:[%s3 + $0x18] sm:$0xf]
    %v145 = vld [vmem:[%s3 + $0x1c] sm:$0xf]
    %v146 = vld [vmem:[%s3 + $0x20] sm:$0xf]
    %v147 = vld [vmem:[%s3 + $0x24] sm:$0xf]
    %v148 = vld [vmem:[%s3 + $0x28] sm:$0xf]
    %v149 = vld [vmem:[%s3 + $0x2c] sm:$0xf]
    %vm150 = vcmask 261120
    %v151 = vsel %vm150, %v129, 0.0
    %152 = vadd.xlane.f32.xlu0 %v151
    %v153 = vpop.xlane.xlu0 %152
    %v154 = vsel %vm150, %v130, 0.0
    %155 = vadd.xlane.f32.xlu0 %v154
    %v156 = vpop.xlane.xlu0 %155
    %v157 = vrcp.pop 32.0
    %v158 = vmul.f32 32.0, %v157
    %v159 = vsub.f32 1.0, %v158
    %v160 = vmul.f32 %v157, %v159
    %v161 = vadd.f32 %v157, %v160
    %vm162 = vweird.f32 %v157
    %v163 = vsel %vm162, %v157, %v161
    %v164 = vmul.f32 %v153, %v163
    %v165 = vmul.f32 %v156, %v163
    %v166 = vsub.f32 %v129, %v164
    %v167 = vsub.f32 %v130, %v165
    %v168 = vmul.f32 %v166, %v166
    %v169 = vmul.f32 %v167, %v167
    %v170 = vsel %vm150, %v168, 0.0
    %171 = vadd.xlane.f32.xlu0 %v170
    %v172 = vpop.xlane.xlu0 %171
    %v173 = vsel %vm150, %v169, 0.0
    %174 = vadd.xlane.f32.xlu0 %v173
    %v175 = vpop.xlane.xlu0 %174
    %v176 = vmul.f32 %v172, %v163
    %v177 = vmul.f32 %v175, %v163
    %v178 = vadd.f32 %v176, 1e-05
    %v179 = vadd.f32 %v177, 1e-05
    %v180 = vrsqrt.pop %v178
    %v181 = vmul.f32 %v180, %v178
    %v182 = vmul.f32 %v181, %v180
    %v183 = vmul.f32 0.5, %v182
    %v184 = vsub.f32 1.5, %v183
    %v185 = vmul.f32 %v180, %v184
    %vm186 = vweird.f32 %v178
    %vm187 = vweird.f32 %v180
    %vm188 = vmor %vm186, %vm187
    %v189 = vsel %vm188, %v180, %v185
    %v190 = vrsqrt.pop %v179
    %v191 = vmul.f32 %v190, %v179
    %v192 = vmul.f32 %v191, %v190
    %v193 = vmul.f32 0.5, %v192
    %v194 = vsub.f32 1.5, %v193
    %v195 = vmul.f32 %v190, %v194
    %vm196 = vweird.f32 %v179
    %vm197 = vweird.f32 %v190
    %vm198 = vmor %vm196, %vm197
    %v199 = vsel %vm198, %v190, %v195
    %v200 = vmul.f32 %v166, %v189
    %v201 = vmul.f32 %v167, %v199
    %v202 = vpack.c.bf16 %v201, %v200
    %v203 = vld [vmem:[#allocation5] sm:$0xf]
    %v204 = vld [vmem:[#allocation5 + $0x4] sm:$0xf]
    %v205 = vld [vmem:[#allocation5 + $0x8] sm:$0xf]
    %v206 = vld [vmem:[#allocation5 + $0xc] sm:$0xf]
    %v207 = vld [vmem:[#allocation11] sm:$0x1]
    %v208 = vperm.slane %v207, 0
    %v213 = vunpack.c.l.b16 %v203
    %v214 = vunpack.c.l.b16 %v204
    %v215 = vunpack.c.l.b16 %v205
    %v216 = vunpack.c.l.b16 %v206
    %v217 = vpack.c.b16 %v214, %v213
    %v218 = vpack.c.b16 %v216, %v215
    %v222 = vsel %vm150, %v202, 0
    %224 = vmatpush.bf16.msra.mxu0 0
    %225 = vmatpush.bf16.msra.mxu0 0
    %226 = vmatpush.bf16.msra.mxu0 0
    %227 = vmatpush.bf16.msra.mxu0 0
    %228 = vmatpush.bf16.msra.mxu0 0
    %229 = vmatpush.bf16.msra.mxu0 0
    %230 = vmatpush.bf16.msra.mxu0 %v218
    %231 = vmatpush.bf16.msra.mxu0 %v217
    %232 = vmatmul.bf16.gmra.mxu0 %v222
    %v233 = vpop.f32.mrf.mxu0
    %v234 = vadd.f32 %v208, %v233
    %v235 = vpop.f32.mrf.mxu0
    %v236 = vadd.f32 %v208, %v235
    %237 = vdwg.mxu0
    %v238 = vpack.c.bf16 %v236, %v234
    %v251 = vunpack.c.l.b16 %v138
    %v252 = vunpack.c.l.b16 %v139
    %v253 = vunpack.c.l.b16 %v140
    %v254 = vunpack.c.l.b16 %v141
    %v255 = vunpack.c.l.b16 %v142
    %v256 = vunpack.c.l.b16 %v143
    %v257 = vunpack.c.l.b16 %v144
    %v258 = vunpack.c.l.b16 %v145
    %v259 = vunpack.c.l.b16 %v146
    %v260 = vunpack.c.l.b16 %v147
    %v261 = vunpack.c.l.b16 %v148
    %v262 = vunpack.c.l.b16 %v149
    %v263 = vpack.c.b16 %v252, %v251
    %v264 = vpack.c.b16 %v254, %v253
    %v265 = vpack.c.b16 %v256, %v255
    %v266 = vpack.c.b16 %v258, %v257
    %v267 = vpack.c.b16 %v260, %v259
    %v268 = vpack.c.b16 %v262, %v261
    %vm275 = vcmask 785408
    %v277 = vsel %vm275, %v238, 0
    %279 = vmatpush.bf16.msra.mxu0 0
    %280 = vmatpush.bf16.msra.mxu0 0
    %281 = vmatpush.bf16.msra.mxu0 %v268
    %282 = vmatpush.bf16.msra.mxu0 %v267
    %283 = vmatpush.bf16.msra.mxu0 %v266
    %284 = vmatpush.bf16.msra.mxu0 %v265
    %285 = vmatpush.bf16.msra.mxu0 %v264
    %286 = vmatpush.bf16.msra.mxu0 %v263
    %287 = vmatmul.bf16.gmra.mxu0 %v277
    %v288 = vpop.f32.mrf.mxu0
    %v289 = vadd.f32 0.0, %v288
    %v290 = vpop.f32.mrf.mxu0
    %v291 = vadd.f32 0.0, %v290
    %292 = vdwg.mxu0
    %v293 = vmul.f32 %v234, %v131
    %v294 = vmul.f32 %v236, %v132
    %v295 = vmul.f32 %v289, %v134
    %v296 = vmul.f32 %v291, %v135
    %v297 = vadd.f32 %v293, %v295
    %v298 = vadd.f32 %v294, %v296
    %v299 = vpack.c.bf16 %v297, %v297
    %v300 = vpack.c.bf16 %v298, %v298
    %v303 = vunpack.c.l.b16 %v299
    %v304 = vunpack.c.l.b16 %v300
    %v305 = vpack.c.b16 %v304, %v303
    %306 = vrot.lane.b32.xlu0 %v305, 96
    %v307 = vpop.permute.xlu0 %306
    %vm308 = vcmask 64512
    %v310 = vsel %vm308, %v305, 0
    %v313 = vsel %vm308, %v307, 0
    %315 = vmatpush.bf16.xpose.msra.mxu0 0
    %316 = vmatpush.bf16.xpose.msra.mxu0 0
    %317 = vmatpush.bf16.xpose.msra.mxu0 0
    %318 = vmatpush.bf16.xpose.msra.mxu0 0
    %319 = vmatpush.bf16.xpose.msra.mxu0 0
    %320 = vmatpush.bf16.xpose.msra.mxu0 0
    %321 = vmatpush.bf16.xpose.msra.mxu0 0
    %322 = vmatpush.bf16.xpose.msra.mxu0 %v313
    %323 = vmatmul.bf16.gmra.mxu0 %v310
    %v324 = vpop.f32.mrf.mxu0
    %v325 = vadd.f32 %v136, %v324
    %v326 = vpop.f32.mrf.mxu0
    %v327 = vadd.f32 %v137, %v326
    %328 = vdwg.mxu0
    %vm329 = vcmask 130048
    %v330 = vsel %vm329, %v325, -inf
    %331 = vmax.xlane.f32.xlu0 %v330
    %v332 = vpop.xlane.xlu0 %331
    %v333 = vsel %vm329, %v327, -inf
    %334 = vmax.xlane.f32.xlu0 %v333
    %v335 = vpop.xlane.xlu0 %334
    %v336 = vsub.f32 %v325, %v332
    %v337 = vsub.f32 %v327, %v335
    %v338 = vmul.f32 %v336, 1.442695
    %v339 = vpow.pop %v338
    %v340 = vmul.f32 %v337, 1.442695
    %v341 = vpow.pop %v340
    %v342 = vsel %vm329, %v339, 0.0
    %343 = vadd.xlane.f32.xlu0 %v342
    %v344 = vpop.xlane.xlu0 %343
    %v345 = vsel %vm329, %v341, 0.0
    %346 = vadd.xlane.f32.xlu0 %v345
    %v347 = vpop.xlane.xlu0 %346
    %v348 = vrcp.pop %v344
    %v349 = vrcp.pop %v347
    %v350 = vmul.f32 %v339, %v348
    %v351 = vmul.f32 %v341, %v349
    %v352 = vpack.c.bf16 %v351, %v350
    %353 = vrot.lane.b32.xlu0 %v305, 64
    %v354 = vpop.permute.xlu0 %353
    %v357 = vsel %vm329, %v352, 0
    %359 = vmatpush.bf16.msra.mxu0 0
    %360 = vmatpush.bf16.msra.mxu0 0
    %361 = vmatpush.bf16.msra.mxu0 0
    %362 = vmatpush.bf16.msra.mxu0 0
    %363 = vmatpush.bf16.msra.mxu0 0
    %364 = vmatpush.bf16.msra.mxu0 0
    %365 = vmatpush.bf16.msra.mxu0 0
    %366 = vmatpush.bf16.msra.mxu0 %v354
    %367 = vmatmul.bf16.gmra.mxu0 %v357
    %v368 = vpop.f32.mrf.mxu0
    %v369 = vadd.f32 0.0, %v368
    %v370 = vpop.f32.mrf.mxu0
    %v371 = vadd.f32 0.0, %v370
    %372 = vdwg.mxu0
    %373 = vrot.lane.b32.xlu0 %v305, 120
    %v374 = vpop.permute.xlu0 %373
    %375 = vrot.lane.b32.xlu0 %v305, 88
    %v376 = vpop.permute.xlu0 %375
    %v378 = vsel %vm308, %v374, 0
    %v381 = vsel %vm308, %v376, 0
    %383 = vmatpush.bf16.xpose.msra.mxu0 0
    %384 = vmatpush.bf16.xpose.msra.mxu0 0
    %385 = vmatpush.bf16.xpose.msra.mxu0 0
    %386 = vmatpush.bf16.xpose.msra.mxu0 0
    %387 = vmatpush.bf16.xpose.msra.mxu0 0
    %388 = vmatpush.bf16.xpose.msra.mxu0 0
    %389 = vmatpush.bf16.xpose.msra.mxu0 0
    %390 = vmatpush.bf16.xpose.msra.mxu0 %v381
    %391 = vmatmul.bf16.gmra.mxu0 %v378
    %v392 = vpop.f32.mrf.mxu0
    %v393 = vadd.f32 %v136, %v392
    %v394 = vpop.f32.mrf.mxu0
    %v395 = vadd.f32 %v137, %v394
    %396 = vdwg.mxu0
    %v397 = vsel %vm329, %v393, -inf
    %398 = vmax.xlane.f32.xlu0 %v397
    %v399 = vpop.xlane.xlu0 %398
    %v400 = vsel %vm329, %v395, -inf
    %401 = vmax.xlane.f32.xlu0 %v400
    %v402 = vpop.xlane.xlu0 %401
    %v403 = vsub.f32 %v393, %v399
    %v404 = vsub.f32 %v395, %v402
    %v405 = vmul.f32 %v403, 1.442695
    %v406 = vpow.pop %v405
    %v407 = vmul.f32 %v404, 1.442695
    %v408 = vpow.pop %v407
    %v409 = vsel %vm329, %v406, 0.0
    %410 = vadd.xlane.f32.xlu0 %v409
    %v411 = vpop.xlane.xlu0 %410
    %v412 = vsel %vm329, %v408, 0.0
    %413 = vadd.xlane.f32.xlu0 %v412
    %v414 = vpop.xlane.xlu0 %413
    %v415 = vrcp.pop %v411
    %v416 = vrcp.pop %v414
    %v417 = vmul.f32 %v406, %v415
    %v418 = vmul.f32 %v408, %v416
    %v419 = vpack.c.bf16 %v418, %v417
    %420 = vrot.lane.b32.xlu0 %v305, 56
    %v421 = vpop.permute.xlu0 %420
    %v424 = vsel %vm329, %v419, 0
    %426 = vmatpush.bf16.msra.mxu0 0
    %427 = vmatpush.bf16.msra.mxu0 0
    %428 = vmatpush.bf16.msra.mxu0 0
    %429 = vmatpush.bf16.msra.mxu0 0
    %430 = vmatpush.bf16.msra.mxu0 0
    %431 = vmatpush.bf16.msra.mxu0 0
    %432 = vmatpush.bf16.msra.mxu0 0
    %433 = vmatpush.bf16.msra.mxu0 %v421
    %434 = vmatmul.bf16.gmra.mxu0 %v424
    %v435 = vpop.f32.mrf.mxu0
    %v436 = vadd.f32 0.0, %v435
    %v437 = vpop.f32.mrf.mxu0
    %v438 = vadd.f32 0.0, %v437
    %439 = vdwg.mxu0
    %440 = vrot.lane.b32.xlu0 %v305, 112
    %v441 = vpop.permute.xlu0 %440
    %442 = vrot.lane.b32.xlu0 %v305, 80
    %v443 = vpop.permute.xlu0 %442
    %v445 = vsel %vm308, %v441, 0
    %v448 = vsel %vm308, %v443, 0
    %450 = vmatpush.bf16.xpose.msra.mxu0 0
    %451 = vmatpush.bf16.xpose.msra.mxu0 0
    %452 = vmatpush.bf16.xpose.msra.mxu0 0
    %453 = vmatpush.bf16.xpose.msra.mxu0 0
    %454 = vmatpush.bf16.xpose.msra.mxu0 0
    %455 = vmatpush.bf16.xpose.msra.mxu0 0
    %456 = vmatpush.bf16.xpose.msra.mxu0 0
    %457 = vmatpush.bf16.xpose.msra.mxu0 %v448
    %458 = vmatmul.bf16.gmra.mxu0 %v445
    %v459 = vpop.f32.mrf.mxu0
    %v460 = vadd.f32 %v136, %v459
    %v461 = vpop.f32.mrf.mxu0
    %v462 = vadd.f32 %v137, %v461
    %463 = vdwg.mxu0
    %v464 = vsel %vm329, %v460, -inf
    %465 = vmax.xlane.f32.xlu0 %v464
    %v466 = vpop.xlane.xlu0 %465
    %v467 = vsel %vm329, %v462, -inf
    %468 = vmax.xlane.f32.xlu0 %v467
    %v469 = vpop.xlane.xlu0 %468
    %v470 = vsub.f32 %v460, %v466
    %v471 = vsub.f32 %v462, %v469
    %v472 = vmul.f32 %v470, 1.442695
    %v473 = vpow.pop %v472
    %v474 = vmul.f32 %v471, 1.442695
    %v475 = vpow.pop %v474
    %v476 = vsel %vm329, %v473, 0.0
    %477 = vadd.xlane.f32.xlu0 %v476
    %v478 = vpop.xlane.xlu0 %477
    %v479 = vsel %vm329, %v475, 0.0
    %480 = vadd.xlane.f32.xlu0 %v479
    %v481 = vpop.xlane.xlu0 %480
    %v482 = vrcp.pop %v478
    %v483 = vrcp.pop %v481
    %v484 = vmul.f32 %v473, %v482
    %v485 = vmul.f32 %v475, %v483
    %v486 = vpack.c.bf16 %v485, %v484
    %487 = vrot.lane.b32.xlu0 %v305, 48
    %v488 = vpop.permute.xlu0 %487
    %v491 = vsel %vm329, %v486, 0
    %493 = vmatpush.bf16.msra.mxu0 0
    %494 = vmatpush.bf16.msra.mxu0 0
    %495 = vmatpush.bf16.msra.mxu0 0
    %496 = vmatpush.bf16.msra.mxu0 0
    %497 = vmatpush.bf16.msra.mxu0 0
    %498 = vmatpush.bf16.msra.mxu0 0
    %499 = vmatpush.bf16.msra.mxu0 0
    %500 = vmatpush.bf16.msra.mxu0 %v488
    %501 = vmatmul.bf16.gmra.mxu0 %v491
    %v502 = vpop.f32.mrf.mxu0
    %v503 = vadd.f32 0.0, %v502
    %v504 = vpop.f32.mrf.mxu0
    %v505 = vadd.f32 0.0, %v504
    %506 = vdwg.mxu0
    %507 = vrot.lane.b32.xlu0 %v305, 104
    %v508 = vpop.permute.xlu0 %507
    %509 = vrot.lane.b32.xlu0 %v305, 72
    %v510 = vpop.permute.xlu0 %509
    %v512 = vsel %vm308, %v508, 0
    %v515 = vsel %vm308, %v510, 0
    %517 = vmatpush.bf16.xpose.msra.mxu0 0
    %518 = vmatpush.bf16.xpose.msra.mxu0 0
    %519 = vmatpush.bf16.xpose.msra.mxu0 0
    %520 = vmatpush.bf16.xpose.msra.mxu0 0
    %521 = vmatpush.bf16.xpose.msra.mxu0 0
    %522 = vmatpush.bf16.xpose.msra.mxu0 0
    %523 = vmatpush.bf16.xpose.msra.mxu0 0
    %524 = vmatpush.bf16.xpose.msra.mxu0 %v515
    %525 = vmatmul.bf16.gmra.mxu0 %v512
    %v526 = vpop.f32.mrf.mxu0
    %v527 = vadd.f32 %v136, %v526
    %v528 = vpop.f32.mrf.mxu0
    %v529 = vadd.f32 %v137, %v528
    %530 = vdwg.mxu0
    %v531 = vsel %vm329, %v527, -inf
    %532 = vmax.xlane.f32.xlu0 %v531
    %v533 = vpop.xlane.xlu0 %532
    %v534 = vsel %vm329, %v529, -inf
    %535 = vmax.xlane.f32.xlu0 %v534
    %v536 = vpop.xlane.xlu0 %535
    %v537 = vsub.f32 %v527, %v533
    %v538 = vsub.f32 %v529, %v536
    %v539 = vmul.f32 %v537, 1.442695
    %v540 = vpow.pop %v539
    %v541 = vmul.f32 %v538, 1.442695
    %v542 = vpow.pop %v541
    %v543 = vsel %vm329, %v540, 0.0
    %544 = vadd.xlane.f32.xlu0 %v543
    %v545 = vpop.xlane.xlu0 %544
    %v546 = vsel %vm329, %v542, 0.0
    %547 = vadd.xlane.f32.xlu0 %v546
    %v548 = vpop.xlane.xlu0 %547
    %v549 = vrcp.pop %v545
    %v550 = vrcp.pop %v548
    %v551 = vmul.f32 %v540, %v549
    %v552 = vmul.f32 %v542, %v550
    %v553 = vpack.c.bf16 %v552, %v551
    %554 = vrot.lane.b32.xlu0 %v305, 40
    %v555 = vpop.permute.xlu0 %554
    %v558 = vsel %vm329, %v553, 0
    %560 = vmatpush.bf16.msra.mxu0 0
    %561 = vmatpush.bf16.msra.mxu0 0
    %562 = vmatpush.bf16.msra.mxu0 0
    %563 = vmatpush.bf16.msra.mxu0 0
    %564 = vmatpush.bf16.msra.mxu0 0
    %565 = vmatpush.bf16.msra.mxu0 0
    %566 = vmatpush.bf16.msra.mxu0 0
    %567 = vmatpush.bf16.msra.mxu0 %v555
    %568 = vmatmul.bf16.gmra.mxu0 %v558
    %v569 = vpop.f32.mrf.mxu0
    %v570 = vadd.f32 0.0, %v569
    %v571 = vpop.f32.mrf.mxu0
    %v572 = vadd.f32 0.0, %v571
    %573 = vdwg.mxu0
    %576 = vrot.lane.b32.xlu0 %v436, 8
    %v577 = vpop.permute.xlu0 %576
    %578 = vrot.lane.b32.xlu0 %v438, 8
    %v579 = vpop.permute.xlu0 %578
    %584 = vrot.lane.b32.xlu0 %v503, 16
    %v585 = vpop.permute.xlu0 %584
    %586 = vrot.lane.b32.xlu0 %v505, 16
    %v587 = vpop.permute.xlu0 %586
    %592 = vrot.lane.b32.xlu0 %v570, 24
    %v593 = vpop.permute.xlu0 %592
    %594 = vrot.lane.b32.xlu0 %v572, 24
    %v595 = vpop.permute.xlu0 %594
    %v598 = vsel %vm308, %v369, %v577
    %v599 = vsel %vm308, %v371, %v579
    %v600 = vsel %vm329, %v598, %v585
    %v601 = vsel %vm329, %v599, %v587
    %vm602 = vcmask 195584
    %v603 = vsel %vm602, %v600, %v593
    %v604 = vsel %vm602, %v601, %v595
    %v605 = vpack.c.bf16 %v604, %v603
    %v606 = vld [vmem:[#allocation7] sm:$0xf]
    %v607 = vld [vmem:[#allocation7 + $0x4] sm:$0xf]
    %v608 = vld [vmem:[#allocation7 + $0x8] sm:$0xf]
    %v609 = vld [vmem:[#allocation7 + $0xc] sm:$0xf]
    %v614 = vunpack.c.l.b16 %v606
    %v615 = vunpack.c.l.b16 %v607
    %v616 = vunpack.c.l.b16 %v608
    %v617 = vunpack.c.l.b16 %v609
    %v618 = vpack.c.b16 %v615, %v614
    %v619 = vpack.c.b16 %v617, %v616
    %v623 = vsel %vm150, %v605, 0
    %625 = vmatpush.bf16.msra.mxu0 0
    %626 = vmatpush.bf16.msra.mxu0 0
    %627 = vmatpush.bf16.msra.mxu0 0
    %628 = vmatpush.bf16.msra.mxu0 0
    %629 = vmatpush.bf16.msra.mxu0 0
    %630 = vmatpush.bf16.msra.mxu0 0
    %631 = vmatpush.bf16.msra.mxu0 %v619
    %632 = vmatpush.bf16.msra.mxu0 %v618
    %633 = vmatmul.bf16.gmra.mxu0 %v623
    %v634 = vpop.f32.mrf.mxu0
    %v635 = vadd.f32 0.0, %v634
    %v636 = vpop.f32.mrf.mxu0
    %v637 = vadd.f32 0.0, %v636
    %638 = vdwg.mxu0
    %v639 = vadd.f32 %v129, %v635
    %v640 = vadd.f32 %v130, %v637
    %v641 = vsel %vm150, %v639, 0.0
    %642 = vadd.xlane.f32.xlu0 %v641
    %v643 = vpop.xlane.xlu0 %642
    %v644 = vsel %vm150, %v640, 0.0
    %645 = vadd.xlane.f32.xlu0 %v644
    %v646 = vpop.xlane.xlu0 %645
    %v647 = vmul.f32 %v643, %v163
    %v648 = vmul.f32 %v646, %v163
    %v649 = vsub.f32 %v639, %v647
    %v650 = vsub.f32 %v640, %v648
    %v651 = vmul.f32 %v649, %v649
    %v652 = vmul.f32 %v650, %v650
    %v653 = vsel %vm150, %v651, 0.0
    %654 = vadd.xlane.f32.xlu0 %v653
    %v655 = vpop.xlane.xlu0 %654
    %v656 = vsel %vm150, %v652, 0.0
    %657 = vadd.xlane.f32.xlu0 %v656
    %v658 = vpop.xlane.xlu0 %657
    %v659 = vmul.f32 %v655, %v163
    %v660 = vmul.f32 %v658, %v163
    %v661 = vadd.f32 %v659, 1e-05
    %v662 = vadd.f32 %v660, 1e-05
    %v663 = vrsqrt.pop %v661
    %v664 = vmul.f32 %v663, %v661
    %v665 = vmul.f32 %v664, %v663
    %v666 = vmul.f32 0.5, %v665
    %v667 = vsub.f32 1.5, %v666
    %v668 = vmul.f32 %v663, %v667
    %vm669 = vweird.f32 %v661
    %vm670 = vweird.f32 %v663
    %vm671 = vmor %vm669, %vm670
    %v672 = vsel %vm671, %v663, %v668
    %v673 = vrsqrt.pop %v662
    %v674 = vmul.f32 %v673, %v662
    %v675 = vmul.f32 %v674, %v673
    %v676 = vmul.f32 0.5, %v675
    %v677 = vsub.f32 1.5, %v676
    %v678 = vmul.f32 %v673, %v677
    %vm679 = vweird.f32 %v662
    %vm680 = vweird.f32 %v673
    %vm681 = vmor %vm679, %vm680
    %v682 = vsel %vm681, %v673, %v678
    %v683 = vmul.f32 %v649, %v672
    %v684 = vmul.f32 %v650, %v682
    %v685 = vpack.c.bf16 %v684, %v683
    %v686 = vld [vmem:[#allocation8] sm:$0xf]
    %v687 = vld [vmem:[#allocation8 + $0x4] sm:$0xf]
    %v688 = vld [vmem:[#allocation8 + $0x8] sm:$0xf]
    %v689 = vld [vmem:[#allocation8 + $0xc] sm:$0xf]
    %v690 = vld [vmem:[#allocation11 + $0x1] sm:$0x1]
    %v691 = vperm.slane %v690, 0
    %v696 = vunpack.c.l.b16 %v686
    %v697 = vunpack.c.l.b16 %v687
    %v698 = vunpack.c.l.b16 %v688
    %v699 = vunpack.c.l.b16 %v689
    %v700 = vpack.c.b16 %v697, %v696
    %v701 = vpack.c.b16 %v699, %v698
    %v705 = vsel %vm150, %v685, 0
    %707 = vmatpush.bf16.msra.mxu0 0
    %708 = vmatpush.bf16.msra.mxu0 0
    %709 = vmatpush.bf16.msra.mxu0 0
    %710 = vmatpush.bf16.msra.mxu0 0
    %711 = vmatpush.bf16.msra.mxu0 0
    %712 = vmatpush.bf16.msra.mxu0 0
    %713 = vmatpush.bf16.msra.mxu0 %v701
    %714 = vmatpush.bf16.msra.mxu0 %v700
    %715 = vmatmul.bf16.gmra.mxu0 %v705
    %v716 = vpop.f32.mrf.mxu0
    %v717 = vadd.f32 %v691, %v716
    %v718 = vpop.f32.mrf.mxu0
    %v719 = vadd.f32 %v691, %v718
    %720 = vdwg.mxu0
    %v721 = vmul.f32 %v717, 0.5
    %v722 = vmul.f32 %v719, 0.5
    %v723 = vmul.f32 %v717, 0.70710677
    %v724 = vmul.f32 %v719, 0.70710677
    %v725 = vmul.f32 %v723, %v723
    %v726 = vmin.f32 16.0, %v725
    %v727 = vmul.f32 %v726, 2.1237322e-06
    %v728 = vadd.f32 %v727, 0.00028619796
    %v729 = vmul.f32 %v726, %v728
    %v730 = vadd.f32 %v729, 0.0036580483
    %v731 = vmul.f32 %v726, %v730
    %v732 = vadd.f32 %v731, 0.05243302
    %v733 = vmul.f32 %v726, %v732
    %v734 = vadd.f32 %v733, 0.18741608
    %v735 = vmul.f32 %v726, %v734
    %v736 = vadd.f32 %v735, 1.1283791
    %v737 = vmul.f32 %v723, %v736
    %v738 = vmul.f32 %v726, 3.8918573e-05
    %v739 = vadd.f32 %v738, 0.001143296
    %v740 = vmul.f32 %v726, %v739
    %v741 = vadd.f32 %v740, 0.014752088
    %v742 = vmul.f32 %v726, %v741
    %v743 = vadd.f32 %v742, 0.112945676
    %v744 = vmul.f32 %v726, %v743
    %v745 = vadd.f32 %v744, 0.4994258
    %v746 = vmul.f32 %v726, %v745
    %v747 = vadd.f32 %v746, 1.0
    %v748 = vrcp.pop %v747
    %v749 = vmul.f32 %v747, %v748
    %v750 = vsub.f32 1.0, %v749
    %v751 = vmul.f32 %v748, %v750
    %v752 = vadd.f32 %v748, %v751
    %vm753 = vweird.f32 %v747
    %vm754 = vweird.f32 %v748
    %vm755 = vmor %vm753, %vm754
    %v756 = vsel %vm755, %v748, %v752
    %v757 = vand.u32 2147483647, %v747
    %vm758 = vcmp.eq.f32.partialorder %v757, 8.507059e+37
    %v759 = vand.u32 %v747, 2147483648
    %v760 = vor.u32 1.1754944e-38, %v759
    %v761 = vsel %vm758, %v760, %v756
    %v762 = vmul.f32 %v737, %v761
    %v763 = vmin.f32 %v762, 1.0
    %v764 = vmax.f32 %v763, -1.0
    %v765 = vmul.f32 %v724, %v724
    %v766 = vmin.f32 16.0, %v765
    %v767 = vmul.f32 %v766, 2.1237322e-06
    %v768 = vadd.f32 %v767, 0.00028619796
    %v769 = vmul.f32 %v766, %v768
    %v770 = vadd.f32 %v769, 0.0036580483
    %v771 = vmul.f32 %v766, %v770
    %v772 = vadd.f32 %v771, 0.05243302
    %v773 = vmul.f32 %v766, %v772
    %v774 = vadd.f32 %v773, 0.18741608
    %v775 = vmul.f32 %v766, %v774
    %v776 = vadd.f32 %v775, 1.1283791
    %v777 = vmul.f32 %v724, %v776
    %v778 = vmul.f32 %v766, 3.8918573e-05
    %v779 = vadd.f32 %v778, 0.001143296
    %v780 = vmul.f32 %v766, %v779
    %v781 = vadd.f32 %v780, 0.014752088
    %v782 = vmul.f32 %v766, %v781
    %v783 = vadd.f32 %v782, 0.112945676
    %v784 = vmul.f32 %v766, %v783
    %v785 = vadd.f32 %v784, 0.4994258
    %v786 = vmul.f32 %v766, %v785
    %v787 = vadd.f32 %v786, 1.0
    %v788 = vrcp.pop %v787
    %v789 = vmul.f32 %v787, %v788
    %v790 = vsub.f32 1.0, %v789
    %v791 = vmul.f32 %v788, %v790
    %v792 = vadd.f32 %v788, %v791
    %vm793 = vweird.f32 %v787
    %vm794 = vweird.f32 %v788
    %vm795 = vmor %vm793, %vm794
    %v796 = vsel %vm795, %v788, %v792
    %v797 = vand.u32 2147483647, %v787
    %vm798 = vcmp.eq.f32.partialorder %v797, 8.507059e+37
    %v799 = vand.u32 %v787, 2147483648
    %v800 = vor.u32 1.1754944e-38, %v799
    %v801 = vsel %vm798, %v800, %v796
    %v802 = vmul.f32 %v777, %v801
    %v803 = vmin.f32 %v802, 1.0
    %v804 = vmax.f32 %v803, -1.0
    %v805 = vadd.f32 %v764, 1.0
    %v806 = vadd.f32 %v804, 1.0
    %v807 = vmul.f32 %v721, %v805
    %v808 = vmul.f32 %v722, %v806
    %v809 = vpack.c.bf16 %v808, %v807
    %v810 = vld [vmem:[%s7] sm:$0xf]
    %v811 = vld [vmem:[%s7 + $0x4] sm:$0xf]
    %v812 = vld [vmem:[%s7 + $0x8] sm:$0xf]
    %v813 = vld [vmem:[%s7 + $0xc] sm:$0xf]
    %v814 = vld [vmem:[%s7 + $0x10] sm:$0xf]
    %v815 = vld [vmem:[%s7 + $0x14] sm:$0xf]
    %v816 = vld [vmem:[%s7 + $0x18] sm:$0xf]
    %v817 = vld [vmem:[%s7 + $0x1c] sm:$0xf]
    %v826 = vunpack.c.l.b16 %v810
    %v827 = vunpack.c.l.b16 %v811
    %v828 = vunpack.c.l.b16 %v812
    %v829 = vunpack.c.l.b16 %v813
    %v830 = vunpack.c.l.b16 %v814
    %v831 = vunpack.c.l.b16 %v815
    %v832 = vunpack.c.l.b16 %v816
    %v833 = vunpack.c.l.b16 %v817
    %v834 = vpack.c.b16 %v827, %v826
    %v835 = vpack.c.b16 %v829, %v828
    %v836 = vpack.c.b16 %v831, %v830
    %v837 = vpack.c.b16 %v833, %v832
    %vm842 = vcmask 523264
    %v844 = vsel %vm842, %v809, 0
    %846 = vmatpush.bf16.msra.mxu0 0
    %847 = vmatpush.bf16.msra.mxu0 0
    %848 = vmatpush.bf16.msra.mxu0 0
    %849 = vmatpush.bf16.msra.mxu0 0
    %850 = vmatpush.bf16.msra.mxu0 %v837
    %851 = vmatpush.bf16.msra.mxu0 %v836
    %852 = vmatpush.bf16.msra.mxu0 %v835
    %853 = vmatpush.bf16.msra.mxu0 %v834
    %854 = vmatmul.bf16.gmra.mxu0 %v844
    %v855 = vpop.f32.mrf.mxu0
    %v856 = vadd.f32 0.0, %v855
    %v857 = vpop.f32.mrf.mxu0
    %v858 = vadd.f32 0.0, %v857
    %859 = vdwg.mxu0
    %v860 = vadd.f32 %v639, %v856
    %v861 = vadd.f32 %v640, %v858
    %v862 = vld [vmem:[#allocation11 + $0x2] sm:$0x1]
    %v863 = vperm.slane %v862, 0
    %v864 = vadd.f32 %v860, %v863
    %v865 = vadd.f32 %v861, %v863
    %v866 = vsel %vm150, %v864, 0.0
    %867 = vadd.xlane.f32.xlu0 %v866
    %v868 = vpop.xlane.xlu0 %867
    %v869 = vsel %vm150, %v865, 0.0
    %870 = vadd.xlane.f32.xlu0 %v869
    %v871 = vpop.xlane.xlu0 %870
    %v872 = vmul.f32 %v868, %v163
    %v873 = vmul.f32 %v871, %v163
    %v874 = vsub.f32 %v864, %v872
    %v875 = vsub.f32 %v865, %v873
    %v876 = vmul.f32 %v874, %v874
    %v877 = vmul.f32 %v875, %v875
    %v878 = vsel %vm150, %v876, 0.0
    %879 = vadd.xlane.f32.xlu0 %v878
    %v880 = vpop.xlane.xlu0 %879
    %v881 = vsel %vm150, %v877, 0.0
    %882 = vadd.xlane.f32.xlu0 %v881
    %v883 = vpop.xlane.xlu0 %882
    %v884 = vmul.f32 %v880, %v163
    %v885 = vmul.f32 %v883, %v163
    %v886 = vadd.f32 %v884, 1e-05
    %v887 = vadd.f32 %v885, 1e-05
    %v888 = vrsqrt.pop %v886
    %v889 = vmul.f32 %v888, %v886
    %v890 = vmul.f32 %v889, %v888
    %v891 = vmul.f32 0.5, %v890
    %v892 = vsub.f32 1.5, %v891
    %v893 = vmul.f32 %v888, %v892
    %vm894 = vweird.f32 %v886
    %vm895 = vweird.f32 %v888
    %vm896 = vmor %vm894, %vm895
    %v897 = vsel %vm896, %v888, %v893
    %v898 = vrsqrt.pop %v887
    %v899 = vmul.f32 %v898, %v887
    %v900 = vmul.f32 %v899, %v898
    %v901 = vmul.f32 0.5, %v900
    %v902 = vsub.f32 1.5, %v901
    %v903 = vmul.f32 %v898, %v902
    %vm904 = vweird.f32 %v887
    %vm905 = vweird.f32 %v898
    %vm906 = vmor %vm904, %vm905
    %v907 = vsel %vm906, %v898, %v903
    %v908 = vmul.f32 %v874, %v897
    %v909 = vmul.f32 %v875, %v907
    %v910 = vpack.c.bf16 %v909, %v908
    %s911 = scalar_lea.vmem [#allocation5], 16
    %v912 = vld [vmem:[%s911] sm:$0xf]
    %v913 = vld [vmem:[%s911 + $0x4] sm:$0xf]
    %v914 = vld [vmem:[%s911 + $0x8] sm:$0xf]
    %v915 = vld [vmem:[%s911 + $0xc] sm:$0xf]
    %v916 = vld [vmem:[#allocation11 + $0x3] sm:$0x1]
    %v917 = vperm.slane %v916, 0
    %v922 = vunpack.c.l.b16 %v912
    %v923 = vunpack.c.l.b16 %v913
    %v924 = vunpack.c.l.b16 %v914
    %v925 = vunpack.c.l.b16 %v915
    %v926 = vpack.c.b16 %v923, %v922
    %v927 = vpack.c.b16 %v925, %v924
    %v931 = vsel %vm150, %v910, 0
    %933 = vmatpush.bf16.msra.mxu0 0
    %934 = vmatpush.bf16.msra.mxu0 0
    %935 = vmatpush.bf16.msra.mxu0 0
    %936 = vmatpush.bf16.msra.mxu0 0
    %937 = vmatpush.bf16.msra.mxu0 0
    %938 = vmatpush.bf16.msra.mxu0 0
    %939 = vmatpush.bf16.msra.mxu0 %v927
    %940 = vmatpush.bf16.msra.mxu0 %v926
    %941 = vmatmul.bf16.gmra.mxu0 %v931
    %v942 = vpop.f32.mrf.mxu0
    %v943 = vadd.f32 %v917, %v942
    %v944 = vpop.f32.mrf.mxu0
    %v945 = vadd.f32 %v917, %v944
    %946 = vdwg.mxu0
    %v947 = vpack.c.bf16 %v945, %v943
    %v949 = vsel %vm275, %v947, 0
    %951 = vmatpush.bf16.msra.mxu0 0
    %952 = vmatpush.bf16.msra.mxu0 0
    %953 = vmatpush.bf16.msra.mxu0 %v268
    %954 = vmatpush.bf16.msra.mxu0 %v267
    %955 = vmatpush.bf16.msra.mxu0 %v266
    %956 = vmatpush.bf16.msra.mxu0 %v265
    %957 = vmatpush.bf16.msra.mxu0 %v264
    %958 = vmatpush.bf16.msra.mxu0 %v263
    %959 = vmatmul.bf16.gmra.mxu0 %v949
    %v960 = vpop.f32.mrf.mxu0
    %v961 = vadd.f32 0.0, %v960
    %v962 = vpop.f32.mrf.mxu0
    %v963 = vadd.f32 0.0, %v962
    %964 = vdwg.mxu0
    %v965 = vmul.f32 %v943, %v131
    %v966 = vmul.f32 %v945, %v132
    %v967 = vmul.f32 %v961, %v134
    %v968 = vmul.f32 %v963, %v135
    %v969 = vadd.f32 %v965, %v967
    %v970 = vadd.f32 %v966, %v968
    %v971 = vpack.c.bf16 %v969, %v969
    %v972 = vpack.c.bf16 %v970, %v970
    %v975 = vunpack.c.l.b16 %v971
    %v976 = vunpack.c.l.b16 %v972
    %v977 = vpack.c.b16 %v976, %v975
    %978 = vrot.lane.b32.xlu0 %v977, 96
    %v979 = vpop.permute.xlu0 %978
    %v981 = vsel %vm308, %v977, 0
    %v984 = vsel %vm308, %v979, 0
    %986 = vmatpush.bf16.xpose.msra.mxu0 0
    %987 = vmatpush.bf16.xpose.msra.mxu0 0
    %988 = vmatpush.bf16.xpose.msra.mxu0 0
    %989 = vmatpush.bf16.xpose.msra.mxu0 0
    %990 = vmatpush.bf16.xpose.msra.mxu0 0
    %991 = vmatpush.bf16.xpose.msra.mxu0 0
    %992 = vmatpush.bf16.xpose.msra.mxu0 0
    %993 = vmatpush.bf16.xpose.msra.mxu0 %v984
    %994 = vmatmul.bf16.gmra.mxu0 %v981
    %v995 = vpop.f32.mrf.mxu0
    %v996 = vadd.f32 %v136, %v995
    %v997 = vpop.f32.mrf.mxu0
    %v998 = vadd.f32 %v137, %v997
    %999 = vdwg.mxu0
    %v1000 = vsel %vm329, %v996, -inf
    %1001 = vmax.xlane.f32.xlu0 %v1000
    %v1002 = vpop.xlane.xlu0 %1001
    %v1003 = vsel %vm329, %v998, -inf
    %1004 = vmax.xlane.f32.xlu0 %v1003
    %v1005 = vpop.xlane.xlu0 %1004
    %v1006 = vsub.f32 %v996, %v1002
    %v1007 = vsub.f32 %v998, %v1005
    %v1008 = vmul.f32 %v1006, 1.442695
    %v1009 = vpow.pop %v1008
    %v1010 = vmul.f32 %v1007, 1.442695
    %v1011 = vpow.pop %v1010
    %v1012 = vsel %vm329, %v1009, 0.0
    %1013 = vadd.xlane.f32.xlu0 %v1012
    %v1014 = vpop.xlane.xlu0 %1013
    %v1015 = vsel %vm329, %v1011, 0.0
    %1016 = vadd.xlane.f32.xlu0 %v1015
    %v1017 = vpop.xlane.xlu0 %1016
    %v1018 = vrcp.pop %v1014
    %v1019 = vrcp.pop %v1017
    %v1020 = vmul.f32 %v1009, %v1018
    %v1021 = vmul.f32 %v1011, %v1019
    %v1022 = vpack.c.bf16 %v1021, %v1020
    %1023 = vrot.lane.b32.xlu0 %v977, 64
    %v1024 = vpop.permute.xlu0 %1023
    %v1027 = vsel %vm329, %v1022, 0
    %1029 = vmatpush.bf16.msra.mxu0 0
    %1030 = vmatpush.bf16.msra.mxu0 0
    %1031 = vmatpush.bf16.msra.mxu0 0
    %1032 = vmatpush.bf16.msra.mxu0 0
    %1033 = vmatpush.bf16.msra.mxu0 0
    %1034 = vmatpush.bf16.msra.mxu0 0
    %1035 = vmatpush.bf16.msra.mxu0 0
    %1036 = vmatpush.bf16.msra.mxu0 %v1024
    %1037 = vmatmul.bf16.gmra.mxu0 %v1027
    %v1038 = vpop.f32.mrf.mxu0
    %v1039 = vadd.f32 0.0, %v1038
    %v1040 = vpop.f32.mrf.mxu0
    %v1041 = vadd.f32 0.0, %v1040
    %1042 = vdwg.mxu0
    %1043 = vrot.lane.b32.xlu0 %v977, 120
    %v1044 = vpop.permute.xlu0 %1043
    %1045 = vrot.lane.b32.xlu0 %v977, 88
    %v1046 = vpop.permute.xlu0 %1045
    %v1048 = vsel %vm308, %v1044, 0
    %v1051 = vsel %vm308, %v1046, 0
    %1053 = vmatpush.bf16.xpose.msra.mxu0 0
    %1054 = vmatpush.bf16.xpose.msra.mxu0 0
    %1055 = vmatpush.bf16.xpose.msra.mxu0 0
    %1056 = vmatpush.bf16.xpose.msra.mxu0 0
    %1057 = vmatpush.bf16.xpose.msra.mxu0 0
    %1058 = vmatpush.bf16.xpose.msra.mxu0 0
    %1059 = vmatpush.bf16.xpose.msra.mxu0 0
    %1060 = vmatpush.bf16.xpose.msra.mxu0 %v1051
    %1061 = vmatmul.bf16.gmra.mxu0 %v1048
    %v1062 = vpop.f32.mrf.mxu0
    %v1063 = vadd.f32 %v136, %v1062
    %v1064 = vpop.f32.mrf.mxu0
    %v1065 = vadd.f32 %v137, %v1064
    %1066 = vdwg.mxu0
    %v1067 = vsel %vm329, %v1063, -inf
    %1068 = vmax.xlane.f32.xlu0 %v1067
    %v1069 = vpop.xlane.xlu0 %1068
    %v1070 = vsel %vm329, %v1065, -inf
    %1071 = vmax.xlane.f32.xlu0 %v1070
    %v1072 = vpop.xlane.xlu0 %1071
    %v1073 = vsub.f32 %v1063, %v1069
    %v1074 = vsub.f32 %v1065, %v1072
    %v1075 = vmul.f32 %v1073, 1.442695
    %v1076 = vpow.pop %v1075
    %v1077 = vmul.f32 %v1074, 1.442695
    %v1078 = vpow.pop %v1077
    %v1079 = vsel %vm329, %v1076, 0.0
    %1080 = vadd.xlane.f32.xlu0 %v1079
    %v1081 = vpop.xlane.xlu0 %1080
    %v1082 = vsel %vm329, %v1078, 0.0
    %1083 = vadd.xlane.f32.xlu0 %v1082
    %v1084 = vpop.xlane.xlu0 %1083
    %v1085 = vrcp.pop %v1081
    %v1086 = vrcp.pop %v1084
    %v1087 = vmul.f32 %v1076, %v1085
    %v1088 = vmul.f32 %v1078, %v1086
    %v1089 = vpack.c.bf16 %v1088, %v1087
    %1090 = vrot.lane.b32.xlu0 %v977, 56
    %v1091 = vpop.permute.xlu0 %1090
    %v1094 = vsel %vm329, %v1089, 0
    %1096 = vmatpush.bf16.msra.mxu0 0
    %1097 = vmatpush.bf16.msra.mxu0 0
    %1098 = vmatpush.bf16.msra.mxu0 0
    %1099 = vmatpush.bf16.msra.mxu0 0
    %1100 = vmatpush.bf16.msra.mxu0 0
    %1101 = vmatpush.bf16.msra.mxu0 0
    %1102 = vmatpush.bf16.msra.mxu0 0
    %1103 = vmatpush.bf16.msra.mxu0 %v1091
    %1104 = vmatmul.bf16.gmra.mxu0 %v1094
    %v1105 = vpop.f32.mrf.mxu0
    %v1106 = vadd.f32 0.0, %v1105
    %v1107 = vpop.f32.mrf.mxu0
    %v1108 = vadd.f32 0.0, %v1107
    %1109 = vdwg.mxu0
    %1110 = vrot.lane.b32.xlu0 %v977, 112
    %v1111 = vpop.permute.xlu0 %1110
    %1112 = vrot.lane.b32.xlu0 %v977, 80
    %v1113 = vpop.permute.xlu0 %1112
    %v1115 = vsel %vm308, %v1111, 0
    %v1118 = vsel %vm308, %v1113, 0
    %1120 = vmatpush.bf16.xpose.msra.mxu0 0
    %1121 = vmatpush.bf16.xpose.msra.mxu0 0
    %1122 = vmatpush.bf16.xpose.msra.mxu0 0
    %1123 = vmatpush.bf16.xpose.msra.mxu0 0
    %1124 = vmatpush.bf16.xpose.msra.mxu0 0
    %1125 = vmatpush.bf16.xpose.msra.mxu0 0
    %1126 = vmatpush.bf16.xpose.msra.mxu0 0
    %1127 = vmatpush.bf16.xpose.msra.mxu0 %v1118
    %1128 = vmatmul.bf16.gmra.mxu0 %v1115
    %v1129 = vpop.f32.mrf.mxu0
    %v1130 = vadd.f32 %v136, %v1129
    %v1131 = vpop.f32.mrf.mxu0
    %v1132 = vadd.f32 %v137, %v1131
    %1133 = vdwg.mxu0
    %v1134 = vsel %vm329, %v1130, -inf
    %1135 = vmax.xlane.f32.xlu0 %v1134
    %v1136 = vpop.xlane.xlu0 %1135
    %v1137 = vsel %vm329, %v1132, -inf
    %1138 = vmax.xlane.f32.xlu0 %v1137
    %v1139 = vpop.xlane.xlu0 %1138
    %v1140 = vsub.f32 %v1130, %v1136
    %v1141 = vsub.f32 %v1132, %v1139
    %v1142 = vmul.f32 %v1140, 1.442695
    %v1143 = vpow.pop %v1142
    %v1144 = vmul.f32 %v1141, 1.442695
    %v1145 = vpow.pop %v1144
    %v1146 = vsel %vm329, %v1143, 0.0
    %1147 = vadd.xlane.f32.xlu0 %v1146
    %v1148 = vpop.xlane.xlu0 %1147
    %v1149 = vsel %vm329, %v1145, 0.0
    %1150 = vadd.xlane.f32.xlu0 %v1149
    %v1151 = vpop.xlane.xlu0 %1150
    %v1152 = vrcp.pop %v1148
    %v1153 = vrcp.pop %v1151
    %v1154 = vmul.f32 %v1143, %v1152
    %v1155 = vmul.f32 %v1145, %v1153
    %v1156 = vpack.c.bf16 %v1155, %v1154
    %1157 = vrot.lane.b32.xlu0 %v977, 48
    %v1158 = vpop.permute.xlu0 %1157
    %v1161 = vsel %vm329, %v1156, 0
    %1163 = vmatpush.bf16.msra.mxu0 0
    %1164 = vmatpush.bf16.msra.mxu0 0
    %1165 = vmatpush.bf16.msra.mxu0 0
    %1166 = vmatpush.bf16.msra.mxu0 0
    %1167 = vmatpush.bf16.msra.mxu0 0
    %1168 = vmatpush.bf16.msra.mxu0 0
    %1169 = vmatpush.bf16.msra.mxu0 0
    %1170 = vmatpush.bf16.msra.mxu0 %v1158
    %1171 = vmatmul.bf16.gmra.mxu0 %v1161
    %v1172 = vpop.f32.mrf.mxu0
    %v1173 = vadd.f32 0.0, %v1172
    %v1174 = vpop.f32.mrf.mxu0
    %v1175 = vadd.f32 0.0, %v1174
    %1176 = vdwg.mxu0
    %1177 = vrot.lane.b32.xlu0 %v977, 104
    %v1178 = vpop.permute.xlu0 %1177
    %1179 = vrot.lane.b32.xlu0 %v977, 72
    %v1180 = vpop.permute.xlu0 %1179
    %v1182 = vsel %vm308, %v1178, 0
    %v1185 = vsel %vm308, %v1180, 0
    %1187 = vmatpush.bf16.xpose.msra.mxu0 0
    %1188 = vmatpush.bf16.xpose.msra.mxu0 0
    %1189 = vmatpush.bf16.xpose.msra.mxu0 0
    %1190 = vmatpush.bf16.xpose.msra.mxu0 0
    %1191 = vmatpush.bf16.xpose.msra.mxu0 0
    %1192 = vmatpush.bf16.xpose.msra.mxu0 0
    %1193 = vmatpush.bf16.xpose.msra.mxu0 0
    %1194 = vmatpush.bf16.xpose.msra.mxu0 %v1185
    %1195 = vmatmul.bf16.gmra.mxu0 %v1182
    %v1196 = vpop.f32.mrf.mxu0
    %v1197 = vadd.f32 %v136, %v1196
    %v1198 = vpop.f32.mrf.mxu0
    %v1199 = vadd.f32 %v137, %v1198
    %1200 = vdwg.mxu0
    %v1201 = vsel %vm329, %v1197, -inf
    %1202 = vmax.xlane.f32.xlu0 %v1201
    %v1203 = vpop.xlane.xlu0 %1202
    %v1204 = vsel %vm329, %v1199, -inf
    %1205 = vmax.xlane.f32.xlu0 %v1204
    %v1206 = vpop.xlane.xlu0 %1205
    %v1207 = vsub.f32 %v1197, %v1203
    %v1208 = vsub.f32 %v1199, %v1206
    %v1209 = vmul.f32 %v1207, 1.442695
    %v1210 = vpow.pop %v1209
    %v1211 = vmul.f32 %v1208, 1.442695
    %v1212 = vpow.pop %v1211
    %v1213 = vsel %vm329, %v1210, 0.0
    %1214 = vadd.xlane.f32.xlu0 %v1213
    %v1215 = vpop.xlane.xlu0 %1214
    %v1216 = vsel %vm329, %v1212, 0.0
    %1217 = vadd.xlane.f32.xlu0 %v1216
    %v1218 = vpop.xlane.xlu0 %1217
    %v1219 = vrcp.pop %v1215
    %v1220 = vrcp.pop %v1218
    %v1221 = vmul.f32 %v1210, %v1219
    %v1222 = vmul.f32 %v1212, %v1220
    %v1223 = vpack.c.bf16 %v1222, %v1221
    %1224 = vrot.lane.b32.xlu0 %v977, 40
    %v1225 = vpop.permute.xlu0 %1224
    %v1228 = vsel %vm329, %v1223, 0
    %1230 = vmatpush.bf16.msra.mxu0 0
    %1231 = vmatpush.bf16.msra.mxu0 0
    %1232 = vmatpush.bf16.msra.mxu0 0
    %1233 = vmatpush.bf16.msra.mxu0 0
    %1234 = vmatpush.bf16.msra.mxu0 0
    %1235 = vmatpush.bf16.msra.mxu0 0
    %1236 = vmatpush.bf16.msra.mxu0 0
    %1237 = vmatpush.bf16.msra.mxu0 %v1225
    %1238 = vmatmul.bf16.gmra.mxu0 %v1228
    %v1239 = vpop.f32.mrf.mxu0
    %v1240 = vadd.f32 0.0, %v1239
    %v1241 = vpop.f32.mrf.mxu0
    %v1242 = vadd.f32 0.0, %v1241
    %1243 = vdwg.mxu0
    %1246 = vrot.lane.b32.xlu0 %v1106, 8
    %v1247 = vpop.permute.xlu0 %1246
    %1248 = vrot.lane.b32.xlu0 %v1108, 8
    %v1249 = vpop.permute.xlu0 %1248
    %1254 = vrot.lane.b32.xlu0 %v1173, 16
    %v1255 = vpop.permute.xlu0 %1254
    %1256 = vrot.lane.b32.xlu0 %v1175, 16
    %v1257 = vpop.permute.xlu0 %1256
    %1262 = vrot.lane.b32.xlu0 %v1240, 24
    %v1263 = vpop.permute.xlu0 %1262
    %1264 = vrot.lane.b32.xlu0 %v1242, 24
    %v1265 = vpop.permute.xlu0 %1264
    %v1268 = vsel %vm308, %v1039, %v1247
    %v1269 = vsel %vm308, %v1041, %v1249
    %v1270 = vsel %vm329, %v1268, %v1255
    %v1271 = vsel %vm329, %v1269, %v1257
    %v1272 = vsel %vm602, %v1270, %v1263
    %v1273 = vsel %vm602, %v1271, %v1265
    %v1274 = vpack.c.bf16 %v1273, %v1272
    %s1275 = scalar_lea.vmem [#allocation7], 16
    %v1276 = vld [vmem:[%s1275] sm:$0xf]
    %v1277 = vld [vmem:[%s1275 + $0x4] sm:$0xf]
    %v1278 = vld [vmem:[%s1275 + $0x8] sm:$0xf]
    %v1279 = vld [vmem:[%s1275 + $0xc] sm:$0xf]
    %v1284 = vunpack.c.l.b16 %v1276
    %v1285 = vunpack.c.l.b16 %v1277
    %v1286 = vunpack.c.l.b16 %v1278
    %v1287 = vunpack.c.l.b16 %v1279
    %v1288 = vpack.c.b16 %v1285, %v1284
    %v1289 = vpack.c.b16 %v1287, %v1286
    %v1293 = vsel %vm150, %v1274, 0
    %1295 = vmatpush.bf16.msra.mxu0 0
    %1296 = vmatpush.bf16.msra.mxu0 0
    %1297 = vmatpush.bf16.msra.mxu0 0
    %1298 = vmatpush.bf16.msra.mxu0 0
    %1299 = vmatpush.bf16.msra.mxu0 0
    %1300 = vmatpush.bf16.msra.mxu0 0
    %1301 = vmatpush.bf16.msra.mxu0 %v1289
    %1302 = vmatpush.bf16.msra.mxu0 %v1288
    %1303 = vmatmul.bf16.gmra.mxu0 %v1293
    %v1304 = vpop.f32.mrf.mxu0
    %v1305 = vadd.f32 0.0, %v1304
    %v1306 = vpop.f32.mrf.mxu0
    %v1307 = vadd.f32 0.0, %v1306
    %1308 = vdwg.mxu0
    %v1309 = vadd.f32 %v864, %v1305
    %v1310 = vadd.f32 %v865, %v1307
    %v1311 = vsel %vm150, %v1309, 0.0
    %1312 = vadd.xlane.f32.xlu0 %v1311
    %v1313 = vpop.xlane.xlu0 %1312
    %v1314 = vsel %vm150, %v1310, 0.0
    %1315 = vadd.xlane.f32.xlu0 %v1314
    %v1316 = vpop.xlane.xlu0 %1315
    %v1317 = vmul.f32 %v1313, %v163
    %v1318 = vmul.f32 %v1316, %v163
    %v1319 = vsub.f32 %v1309, %v1317
    %v1320 = vsub.f32 %v1310, %v1318
    %v1321 = vmul.f32 %v1319, %v1319
    %v1322 = vmul.f32 %v1320, %v1320
    %v1323 = vsel %vm150, %v1321, 0.0
    %1324 = vadd.xlane.f32.xlu0 %v1323
    %v1325 = vpop.xlane.xlu0 %1324
    %v1326 = vsel %vm150, %v1322, 0.0
    %1327 = vadd.xlane.f32.xlu0 %v1326
    %v1328 = vpop.xlane.xlu0 %1327
    %v1329 = vmul.f32 %v1325, %v163
    %v1330 = vmul.f32 %v1328, %v163
    %v1331 = vadd.f32 %v1329, 1e-05
    %v1332 = vadd.f32 %v1330, 1e-05
    %v1333 = vrsqrt.pop %v1331
    %v1334 = vmul.f32 %v1333, %v1331
    %v1335 = vmul.f32 %v1334, %v1333
    %v1336 = vmul.f32 0.5, %v1335
    %v1337 = vsub.f32 1.5, %v1336
    %v1338 = vmul.f32 %v1333, %v1337
    %vm1339 = vweird.f32 %v1331
    %vm1340 = vweird.f32 %v1333
    %vm1341 = vmor %vm1339, %vm1340
    %v1342 = vsel %vm1341, %v1333, %v1338
    %v1343 = vrsqrt.pop %v1332
    %v1344 = vmul.f32 %v1343, %v1332
    %v1345 = vmul.f32 %v1344, %v1343
    %v1346 = vmul.f32 0.5, %v1345
    %v1347 = vsub.f32 1.5, %v1346
    %v1348 = vmul.f32 %v1343, %v1347
    %vm1349 = vweird.f32 %v1332
    %vm1350 = vweird.f32 %v1343
    %vm1351 = vmor %vm1349, %vm1350
    %v1352 = vsel %vm1351, %v1343, %v1348
    %v1353 = vmul.f32 %v1319, %v1342
    %v1354 = vmul.f32 %v1320, %v1352
    %v1355 = vpack.c.bf16 %v1354, %v1353
    %s1356 = scalar_lea.vmem [#allocation8], 16
    %v1357 = vld [vmem:[%s1356] sm:$0xf]
    %v1358 = vld [vmem:[%s1356 + $0x4] sm:$0xf]
    %v1359 = vld [vmem:[%s1356 + $0x8] sm:$0xf]
    %v1360 = vld [vmem:[%s1356 + $0xc] sm:$0xf]
    %v1361 = vld [vmem:[#allocation11 + $0x4] sm:$0x1]
    %v1362 = vperm.slane %v1361, 0
    %v1367 = vunpack.c.l.b16 %v1357
    %v1368 = vunpack.c.l.b16 %v1358
    %v1369 = vunpack.c.l.b16 %v1359
    %v1370 = vunpack.c.l.b16 %v1360
    %v1371 = vpack.c.b16 %v1368, %v1367
    %v1372 = vpack.c.b16 %v1370, %v1369
    %v1376 = vsel %vm150, %v1355, 0
    %1378 = vmatpush.bf16.msra.mxu0 0
    %1379 = vmatpush.bf16.msra.mxu0 0
    %1380 = vmatpush.bf16.msra.mxu0 0
    %1381 = vmatpush.bf16.msra.mxu0 0
    %1382 = vmatpush.bf16.msra.mxu0 0
    %1383 = vmatpush.bf16.msra.mxu0 0
    %1384 = vmatpush.bf16.msra.mxu0 %v1372
    %1385 = vmatpush.bf16.msra.mxu0 %v1371
    %1386 = vmatmul.bf16.gmra.mxu0 %v1376
    %v1387 = vpop.f32.mrf.mxu0
    %v1388 = vadd.f32 %v1362, %v1387
    %v1389 = vpop.f32.mrf.mxu0
    %v1390 = vadd.f32 %v1362, %v1389
    %1391 = vdwg.mxu0
    %v1392 = vmul.f32 %v1388, 0.5
    %v1393 = vmul.f32 %v1390, 0.5
    %v1394 = vmul.f32 %v1388, 0.70710677
    %v1395 = vmul.f32 %v1390, 0.70710677
    %v1396 = vmul.f32 %v1394, %v1394
    %v1397 = vmin.f32 16.0, %v1396
    %v1398 = vmul.f32 %v1397, 2.1237322e-06
    %v1399 = vadd.f32 %v1398, 0.00028619796
    %v1400 = vmul.f32 %v1397, %v1399
    %v1401 = vadd.f32 %v1400, 0.0036580483
    %v1402 = vmul.f32 %v1397, %v1401
    %v1403 = vadd.f32 %v1402, 0.05243302
    %v1404 = vmul.f32 %v1397, %v1403
    %v1405 = vadd.f32 %v1404, 0.18741608
    %v1406 = vmul.f32 %v1397, %v1405
    %v1407 = vadd.f32 %v1406, 1.1283791
    %v1408 = vmul.f32 %v1394, %v1407
    %v1409 = vmul.f32 %v1397, 3.8918573e-05
    %v1410 = vadd.f32 %v1409, 0.001143296
    %v1411 = vmul.f32 %v1397, %v1410
    %v1412 = vadd.f32 %v1411, 0.014752088
    %v1413 = vmul.f32 %v1397, %v1412
    %v1414 = vadd.f32 %v1413, 0.112945676
    %v1415 = vmul.f32 %v1397, %v1414
    %v1416 = vadd.f32 %v1415, 0.4994258
    %v1417 = vmul.f32 %v1397, %v1416
    %v1418 = vadd.f32 %v1417, 1.0
    %v1419 = vrcp.pop %v1418
    %v1420 = vmul.f32 %v1418, %v1419
    %v1421 = vsub.f32 1.0, %v1420
    %v1422 = vmul.f32 %v1419, %v1421
    %v1423 = vadd.f32 %v1419, %v1422
    %vm1424 = vweird.f32 %v1418
    %vm1425 = vweird.f32 %v1419
    %vm1426 = vmor %vm1424, %vm1425
    %v1427 = vsel %vm1426, %v1419, %v1423
    %v1428 = vand.u32 2147483647, %v1418
    %vm1429 = vcmp.eq.f32.partialorder %v1428, 8.507059e+37
    %v1430 = vand.u32 %v1418, 2147483648
    %v1431 = vor.u32 1.1754944e-38, %v1430
    %v1432 = vsel %vm1429, %v1431, %v1427
    %v1433 = vmul.f32 %v1408, %v1432
    %v1434 = vmin.f32 %v1433, 1.0
    %v1435 = vmax.f32 %v1434, -1.0
    %v1436 = vmul.f32 %v1395, %v1395
    %v1437 = vmin.f32 16.0, %v1436
    %v1438 = vmul.f32 %v1437, 2.1237322e-06
    %v1439 = vadd.f32 %v1438, 0.00028619796
    %v1440 = vmul.f32 %v1437, %v1439
    %v1441 = vadd.f32 %v1440, 0.0036580483
    %v1442 = vmul.f32 %v1437, %v1441
    %v1443 = vadd.f32 %v1442, 0.05243302
    %v1444 = vmul.f32 %v1437, %v1443
    %v1445 = vadd.f32 %v1444, 0.18741608
    %v1446 = vmul.f32 %v1437, %v1445
    %v1447 = vadd.f32 %v1446, 1.1283791
    %v1448 = vmul.f32 %v1395, %v1447
    %v1449 = vmul.f32 %v1437, 3.8918573e-05
    %v1450 = vadd.f32 %v1449, 0.001143296
    %v1451 = vmul.f32 %v1437, %v1450
    %v1452 = vadd.f32 %v1451, 0.014752088
    %v1453 = vmul.f32 %v1437, %v1452
    %v1454 = vadd.f32 %v1453, 0.112945676
    %v1455 = vmul.f32 %v1437, %v1454
    %v1456 = vadd.f32 %v1455, 0.4994258
    %v1457 = vmul.f32 %v1437, %v1456
    %v1458 = vadd.f32 %v1457, 1.0
    %v1459 = vrcp.pop %v1458
    %v1460 = vmul.f32 %v1458, %v1459
    %v1461 = vsub.f32 1.0, %v1460
    %v1462 = vmul.f32 %v1459, %v1461
    %v1463 = vadd.f32 %v1459, %v1462
    %vm1464 = vweird.f32 %v1458
    %vm1465 = vweird.f32 %v1459
    %vm1466 = vmor %vm1464, %vm1465
    %v1467 = vsel %vm1466, %v1459, %v1463
    %v1468 = vand.u32 2147483647, %v1458
    %vm1469 = vcmp.eq.f32.partialorder %v1468, 8.507059e+37
    %v1470 = vand.u32 %v1458, 2147483648
    %v1471 = vor.u32 1.1754944e-38, %v1470
    %v1472 = vsel %vm1469, %v1471, %v1467
    %v1473 = vmul.f32 %v1448, %v1472
    %v1474 = vmin.f32 %v1473, 1.0
    %v1475 = vmax.f32 %v1474, -1.0
    %v1476 = vadd.f32 %v1435, 1.0
    %v1477 = vadd.f32 %v1475, 1.0
    %v1478 = vmul.f32 %v1392, %v1476
    %v1479 = vmul.f32 %v1393, %v1477
    %v1480 = vpack.c.bf16 %v1479, %v1478
    %s1481 = scalar_lea.vmem %s7, 32
    %v1482 = vld [vmem:[%s1481] sm:$0xf]
    %v1483 = vld [vmem:[%s1481 + $0x4] sm:$0xf]
    %v1484 = vld [vmem:[%s1481 + $0x8] sm:$0xf]
    %v1485 = vld [vmem:[%s1481 + $0xc] sm:$0xf]
    %v1486 = vld [vmem:[%s1481 + $0x10] sm:$0xf]
    %v1487 = vld [vmem:[%s1481 + $0x14] sm:$0xf]
    %v1488 = vld [vmem:[%s1481 + $0x18] sm:$0xf]
    %v1489 = vld [vmem:[%s1481 + $0x1c] sm:$0xf]
    %v1498 = vunpack.c.l.b16 %v1482
    %v1499 = vunpack.c.l.b16 %v1483
    %v1500 = vunpack.c.l.b16 %v1484
    %v1501 = vunpack.c.l.b16 %v1485
    %v1502 = vunpack.c.l.b16 %v1486
    %v1503 = vunpack.c.l.b16 %v1487
    %v1504 = vunpack.c.l.b16 %v1488
    %v1505 = vunpack.c.l.b16 %v1489
    %v1506 = vpack.c.b16 %v1499, %v1498
    %v1507 = vpack.c.b16 %v1501, %v1500
    %v1508 = vpack.c.b16 %v1503, %v1502
    %v1509 = vpack.c.b16 %v1505, %v1504
    %v1515 = vsel %vm842, %v1480, 0
    %1517 = vmatpush.bf16.msra.mxu0 0
    %1518 = vmatpush.bf16.msra.mxu0 0
    %1519 = vmatpush.bf16.msra.mxu0 0
    %1520 = vmatpush.bf16.msra.mxu0 0
    %1521 = vmatpush.bf16.msra.mxu0 %v1509
    %1522 = vmatpush.bf16.msra.mxu0 %v1508
    %1523 = vmatpush.bf16.msra.mxu0 %v1507
    %1524 = vmatpush.bf16.msra.mxu0 %v1506
    %1525 = vmatmul.bf16.gmra.mxu0 %v1515
    %v1526 = vpop.f32.mrf.mxu0
    %v1527 = vadd.f32 0.0, %v1526
    %v1528 = vpop.f32.mrf.mxu0
    %v1529 = vadd.f32 0.0, %v1528
    %1530 = vdwg.mxu0
    %v1531 = vadd.f32 %v1309, %v1527
    %v1532 = vadd.f32 %v1310, %v1529
    %v1533 = vld [vmem:[#allocation11 + $0x5] sm:$0x1]
    %v1534 = vperm.slane %v1533, 0
    %v1535 = vadd.f32 %v1531, %v1534
    %v1536 = vadd.f32 %v1532, %v1534
    %v1537 = vsel %vm150, %v1535, 0.0
    %1538 = vadd.xlane.f32.xlu0 %v1537
    %v1539 = vpop.xlane.xlu0 %1538
    %v1540 = vsel %vm150, %v1536, 0.0
    %1541 = vadd.xlane.f32.xlu0 %v1540
    %v1542 = vpop.xlane.xlu0 %1541
    %v1543 = vmul.f32 %v1539, %v163
    %v1544 = vmul.f32 %v1542, %v163
    %v1545 = vsub.f32 %v1535, %v1543
    %v1546 = vsub.f32 %v1536, %v1544
    %v1547 = vmul.f32 %v1545, %v1545
    %v1548 = vmul.f32 %v1546, %v1546
    %v1549 = vsel %vm150, %v1547, 0.0
    %1550 = vadd.xlane.f32.xlu0 %v1549
    %v1551 = vpop.xlane.xlu0 %1550
    %v1552 = vsel %vm150, %v1548, 0.0
    %1553 = vadd.xlane.f32.xlu0 %v1552
    %v1554 = vpop.xlane.xlu0 %1553
    %v1555 = vmul.f32 %v1551, %v163
    %v1556 = vmul.f32 %v1554, %v163
    %v1557 = vadd.f32 %v1555, 1e-05
    %v1558 = vadd.f32 %v1556, 1e-05
    %v1559 = vrsqrt.pop %v1557
    %v1560 = vmul.f32 %v1559, %v1557
    %v1561 = vmul.f32 %v1560, %v1559
    %v1562 = vmul.f32 0.5, %v1561
    %v1563 = vsub.f32 1.5, %v1562
    %v1564 = vmul.f32 %v1559, %v1563
    %vm1565 = vweird.f32 %v1557
    %vm1566 = vweird.f32 %v1559
    %vm1567 = vmor %vm1565, %vm1566
    %v1568 = vsel %vm1567, %v1559, %v1564
    %v1569 = vrsqrt.pop %v1558
    %v1570 = vmul.f32 %v1569, %v1558
    %v1571 = vmul.f32 %v1570, %v1569
    %v1572 = vmul.f32 0.5, %v1571
    %v1573 = vsub.f32 1.5, %v1572
    %v1574 = vmul.f32 %v1569, %v1573
    %vm1575 = vweird.f32 %v1558
    %vm1576 = vweird.f32 %v1569
    %vm1577 = vmor %vm1575, %vm1576
    %v1578 = vsel %vm1577, %v1569, %v1574
    %v1579 = vmul.f32 %v1545, %v1568
    %v1580 = vmul.f32 %v1546, %v1578
    %v1581 = vpack.c.bf16 %v1580, %v1579
    %v1582 = vld [vmem:[#allocation10] sm:$0xf]
    %v1583 = vld [vmem:[#allocation10 + $0x4] sm:$0xf]
    %v1584 = vld [vmem:[#allocation10 + $0x8] sm:$0xf]
    %v1585 = vld [vmem:[#allocation10 + $0xc] sm:$0xf]
    %v1586 = vld [vmem:[#allocation11 + $0x6] sm:$0x1]
    %v1587 = vperm.slane %v1586, 0
    %v1592 = vunpack.c.l.b16 %v1582
    %v1593 = vunpack.c.l.b16 %v1583
    %v1594 = vunpack.c.l.b16 %v1584
    %v1595 = vunpack.c.l.b16 %v1585
    %v1596 = vpack.c.b16 %v1593, %v1592
    %v1597 = vpack.c.b16 %v1595, %v1594
    %v1601 = vsel %vm150, %v1581, 0
    %1603 = vmatpush.bf16.msra.mxu0 0
    %1604 = vmatpush.bf16.msra.mxu0 0
    %1605 = vmatpush.bf16.msra.mxu0 0
    %1606 = vmatpush.bf16.msra.mxu0 0
    %1607 = vmatpush.bf16.msra.mxu0 0
    %1608 = vmatpush.bf16.msra.mxu0 0
    %1609 = vmatpush.bf16.msra.mxu0 %v1597
    %1610 = vmatpush.bf16.msra.mxu0 %v1596
    %1611 = vmatmul.bf16.gmra.mxu0 %v1601
    %v1612 = vpop.f32.mrf.mxu0
    %v1613 = vadd.f32 %v1587, %v1612
    %v1614 = vpop.f32.mrf.mxu0
    %v1615 = vadd.f32 %v1587, %v1614
    %1616 = vdwg.mxu0
    %1617 = vst [vmem:[#allocation13] sm:$0xff] %v1613
    %1618 = vst [vmem:[#allocation13 + $0x8] sm:$0xff] %v1615
    // Predicated region
    $region66: #{tpu_custom_call.1} parent=1 // pred_check
      _
    $region67: #{tpu_custom_call.1} parent=1 // pred_check_branch
      %1620 = sbr.rel (0) target = $region69
    $region68: #{tpu_custom_call.1} parent=1 // pred_region
      %1622 = vsyncadd [#allocation4], 0
      %s1623 = sshll.u32 [#allocation13], 4
      %s1624 = int_to_ptr.vmem [resolvable:$true] %s1623
      %s1625 = sshll.u32 %s10, 4
      %s1626 = int_to_ptr.hbm [resolvable:$true] %s1625
      %1631 = dma.vmem_to_hbm [thread:$0]  %s1624, 256, %s1626, [#allocation4], 128, 128, 8
    $region69: #{tpu_custom_call.1} parent=1 // pred_fallthru
      _
    // Predicated region
    $region70: #{tpu_custom_call.1} parent=1 // pred_check
      _
    $region71: #{tpu_custom_call.1} parent=1 // pred_check_branch
      %1633 = sbr.rel (0) target = $region73
    $region72: #{tpu_custom_call.1} parent=1 // pred_region
      %1635 = dma.done [#allocation4], 256
    $region73: #{tpu_custom_call.1} parent=1 // pred_fallthru
      _
    %1636 = vsyncpa [#allocation3], 1
    %1637 = vsyncpa [#allocation6], 1
    %1638 = vsyncpa [#allocation9], 1
    %1639 = vsyncpa [#allocation12], 1
    %1640 = vsyncpa [#allocation4], 1

</llo_original>
